<compile_context>
chip_gen: v7x
topology: tpu7x:2x2x1
jax: 0.10.0
libtpu: 0.0.40
codegen_flags: <defaults>
</compile_context>

<pallas_src>
import functools

import jax
import jax.numpy as jnp
from jax.experimental import pallas as pl
from jax.experimental.pallas import tpu as pltpu

C = 72                                    # real channels (hard-coded in module)
CP = 128                                  # lane-padded channels
K = 3                                     # kernel_size
NUM_LEVELS = 3                            # number of TemporalBlocks
PAD_MAX = (K - 1) * 2 ** (NUM_LEVELS - 1)   # largest causal pad = 8
PAD_ROWS = 16                             # scratch zero region (>= PAD_MAX,
                                          # multiple of the bf16 16-row tile)


# ----------------------------------------------------------------------------
# Fused kernel: all 3 blocks chained, `nb` batch elements per grid step.
# ----------------------------------------------------------------------------
def _tcn_fused_kernel(x_ref, wa_ref, ba_ref, wb_ref, bb_ref, o_ref,
                      xbuf_ref, *, length, nb):
    """x_ref:  (nb, C, L) f32    input block (PyTorch Conv1d NCL layout)
       wa_ref: (3, K*CP, CP) bf16  conv1 weights per block, rows = (tap, c_in)
       ba_ref: (3, 1, CP)   f32    conv1 biases per block
       wb_ref: (3, K*CP, CP) bf16  conv2 weights per block
       bb_ref: (3, 1, CP)   f32    conv2 biases per block
       o_ref:  (nb, C, L) f32    output block (NCL)
       xbuf_ref: (nb, PAD_ROWS + L, CP) bf16 scratch; rows [0, PAD_ROWS) of
                 every batch element stay zero (causal left-pad), rows
                 [PAD_ROWS, PAD_ROWS + L) hold the current conv input.
                 Reused by all 6 convs.
    """
    m = nb * length

    # Causal zero-pad rows (written once per grid step, never overwritten).
    xbuf_ref[:, pl.ds(0, PAD_ROWS), :] = jnp.zeros((nb, PAD_ROWS, CP),
                                                   jnp.bfloat16)

    # In-kernel NCL -> (L, CP): zero-pad channels 72 -> 128 (so conv/bias/ReLU
    # keep padded lanes exactly zero) and transpose each batch element.
    rows = []
    for b in range(nb):                                  # nb <= 2, static
        xb = x_ref[b]                                                # (C, L)
        xb = jnp.concatenate(
            [xb, jnp.zeros((CP - C, length), jnp.float32)], axis=0)  # (CP, L)
        rows.append(jnp.transpose(xb))                               # (L, CP)
    x = jnp.concatenate(rows, axis=0) if nb > 1 else rows[0]         # (M, CP)

    def causal_conv(inp, w, bias, dilation):
        # inp: (M, CP) f32, w: (K*CP, CP) bf16, bias: (1, CP) f32
        inp16 = inp.astype(jnp.bfloat16)
        # Store once per conv (aligned to the bf16 16-row tile at PAD_ROWS).
        xbuf_ref[:, pl.ds(PAD_ROWS, length), :] = inp16.reshape(nb, length, CP)
        # y[l] = sum_t W_t @ x[l - (K-1-t)*dilation]  (zeros for negative idx)
        taps = []
        for t in range(K):
            shift = (K - 1 - t) * dilation
            if shift == 0:
                taps.append(inp16)            # already in vregs; skip re-load
            else:
                tap = xbuf_ref[:, pl.ds(PAD_ROWS - shift, length), :]
                taps.append(tap.reshape(m, CP))
        im2col = jnp.concatenate(taps, axis=1)                # (M, K*CP) bf16
        y = jnp.dot(im2col, w, preferred_element_type=jnp.float32)   # (M, CP)
        return jnp.maximum(y + bias, 0.0)     # ReLU; dropout = identity (eval)

    for i in range(NUM_LEVELS):               # static unroll over the 3 blocks
        d = 2 ** i
        h = causal_conv(x, wa_ref[i], ba_ref[i], d)
        h = causal_conv(h, wb_ref[i], bb_ref[i], d)
        x = jnp.maximum(h + x, 0.0)            # residual (downsample=None)+ReLU

    # In-kernel (L, CP) -> NCL: transpose back and drop the padded lanes.
    for b in range(nb):
        xb = x[b * length:(b + 1) * length, :]                # (L, CP)
        o_ref[b] = jnp.transpose(xb)[:C, :]                   # (C, L)


# ----------------------------------------------------------------------------
# Parameter preparation (done once, outside the hot path).
# ----------------------------------------------------------------------------
def _weight_norm(v, g):
    """weight_norm with dim=0 (per output channel). v: (K, C, C), g: (C,)."""
    norm = jnp.sqrt(jnp.sum(v * v, axis=(0, 1), keepdims=True))
    return v * (g[None, None, :] / norm)


def _pack_conv_weight(v, g):
    w = _weight_norm(v, g)                                     # (K, C, C) f32
    w = jnp.pad(w, ((0, 0), (0, CP - C), (0, CP - C)))         # (K, CP, CP)
    return w.reshape(K * CP, CP).astype(jnp.bfloat16)          # MXU layout


def _pack_bias(b):
    return jnp.pad(b.reshape(1, C), ((0, 0), (0, CP - C)))     # (1, CP) f32


def init_raw_params(key):
    """Deterministic synthetic per-block parameters (v, g, b for both convs)."""
    raw = []
    for i in range(NUM_LEVELS):
        keys = jax.random.split(jax.random.fold_in(key, i), 6)
        v1 = 0.01 * jax.random.normal(keys[0], (K, C, C), jnp.float32)
        g1 = 1.0 + 0.1 * jax.random.normal(keys[1], (C,), jnp.float32)
        b1 = 0.01 * jax.random.normal(keys[2], (C,), jnp.float32)
        v2 = 0.01 * jax.random.normal(keys[3], (K, C, C), jnp.float32)
        g2 = 1.0 + 0.1 * jax.random.normal(keys[4], (C,), jnp.float32)
        b2 = 0.01 * jax.random.normal(keys[5], (C,), jnp.float32)
        raw.append((v1, g1, b1, v2, g2, b2))
    return raw


def pack_params(raw):
    """weight_norm + pad to CP + reshape to (K*CP, CP) bf16, stacked per block."""
    wa = jnp.stack([_pack_conv_weight(v1, g1) for (v1, g1, _, _, _, _) in raw])
    ba = jnp.stack([_pack_bias(b1) for (_, _, b1, _, _, _) in raw])
    wb = jnp.stack([_pack_conv_weight(v2, g2) for (_, _, _, v2, g2, _) in raw])
    bb = jnp.stack([_pack_bias(b2) for (_, _, _, _, _, b2) in raw])
    return wa, ba, wb, bb


# ----------------------------------------------------------------------------
# Chip-aware batch folding.
# ----------------------------------------------------------------------------
def _batch_per_step(batch):
    """Batch elements folded into each grid step.

    Multi-TensorCore chips (v7x, megacore v4/v5p): half the batch per grid
    step so dimension_semantics=("parallel",) spreads work across cores.
    Single-TC chips (v5e/v6e): fold the whole batch into one grid step --
    the grid is just a serial loop there, so fewer steps + taller M wins.
    """
    try:
        kind = jax.devices()[0].device_kind.lower()
    except Exception:
        kind = ""
    multi_tc = any(tag in kind for tag in ("v7", "7x", "v4", "v5p"))
    if multi_tc and batch % 2 == 0 and batch > 1:
        return batch // 2
    return batch


# ----------------------------------------------------------------------------
# Public forward pass (PyTorch Conv1d NCL layout at the boundary; no wrapper
# transposes / pads / slices -- the kernel handles the layout internally).
# ----------------------------------------------------------------------------
@jax.jit
def temporal_conv_net(x_ncl, params):
    """x_ncl: (B, 72, L) f32 -> (B, 72, L) f32."""
    wa, ba, wb, bb = params
    B, _, L = x_ncl.shape
    nb = _batch_per_step(B)

    kernel = functools.partial(_tcn_fused_kernel, length=L, nb=nb)
    return pl.pallas_call(
        kernel,
        out_shape=jax.ShapeDtypeStruct((B, C, L), jnp.float32),
        grid_spec=pltpu.PrefetchScalarGridSpec(
            num_scalar_prefetch=0,
            grid=(B // nb,),
            in_specs=[
                pl.BlockSpec((nb, C, L), lambda g: (g, 0, 0)),                # x
                pl.BlockSpec((NUM_LEVELS, K * CP, CP), lambda g: (0, 0, 0)),  # wa
                pl.BlockSpec((NUM_LEVELS, 1, CP), lambda g: (0, 0, 0)),       # ba
                pl.BlockSpec((NUM_LEVELS, K * CP, CP), lambda g: (0, 0, 0)),  # wb
                pl.BlockSpec((NUM_LEVELS, 1, CP), lambda g: (0, 0, 0)),       # bb
            ],
            out_specs=pl.BlockSpec((nb, C, L), lambda g: (g, 0, 0)),
            scratch_shapes=[pltpu.VMEM((nb, PAD_ROWS + L, CP), jnp.bfloat16)],
        ),
        compiler_params=pltpu.CompilerParams(
            dimension_semantics=("parallel",)),
    )(x_ncl, wa, ba, wb, bb)


# ----------------------------------------------------------------------------
# Pure-JAX f32 reference (same math, no Pallas) for a sanity comparison.
# ----------------------------------------------------------------------------
def _ref_causal_conv(x, w, b, dilation):
    # x: (B, L, C), w: (K, C, C) with W[t, ci, co], b: (C,)
    L = x.shape[1]
    y = jnp.zeros(x.shape[:2] + (w.shape[2],), jnp.float32)
    for t in range(K):
        shift = (K - 1 - t) * dilation
        xs = jnp.pad(x, ((0, 0), (shift, 0), (0, 0)))[:, :L, :]
        y = y + jnp.einsum("blc,cd->bld", xs, w[t])
    return y + b


def temporal_conv_net_ref(x_ncl, raw):
    x = jnp.transpose(x_ncl, (0, 2, 1))
    for i, (v1, g1, b1, v2, g2, b2) in enumerate(raw):
        d = 2 ** i
        h = jax.nn.relu(_ref_causal_conv(x, _weight_norm(v1, g1), b1, d))
        h = jax.nn.relu(_ref_causal_conv(h, _weight_norm(v2, g2), b2, d))
        x = jax.nn.relu(h + x)
    return jnp.transpose(x, (0, 2, 1))


if __name__ == "__main__":
    key = jax.random.PRNGKey(0)
    B, L = 2, 16
    x = jax.random.normal(jax.random.fold_in(key, 100), (B, C, L), jnp.float32)
    raw = init_raw_params(key)
    params = pack_params(raw)

    out = temporal_conv_net(x, params)
    jax.block_until_ready(out)

    assert out.shape == (B, C, L), out.shape
    assert out.dtype == jnp.float32
    assert bool(jnp.all(jnp.isfinite(out)))
    assert bool(jnp.all(out >= 0.0))       # final op of every block is ReLU

    # Loose comparison against the f32 reference (kernel uses bf16 MXU inputs;
    # rounding compounds through the 3 residual blocks).
    ref = temporal_conv_net_ref(x, raw)
    err = float(jnp.max(jnp.abs(out - ref)))
    tol = 5e-2 * (1.0 + float(jnp.max(jnp.abs(ref))))
    assert err < tol, (err, tol)

    print("KERNEL_OK")
</pallas_src>

<mosaic_0001>
module attributes {stable_mosaic.version = 11 : i64} {
  func.func @_tcn_fused_kernel(%arg0: i32, %arg1: memref<2x72x16xf32, #tpu.memory_space<vmem>>, %arg2: memref<3x384x128xbf16, #tpu.memory_space<vmem>>, %arg3: memref<3x1x128xf32, #tpu.memory_space<vmem>>, %arg4: memref<3x384x128xbf16, #tpu.memory_space<vmem>>, %arg5: memref<3x1x128xf32, #tpu.memory_space<vmem>>, %arg6: memref<2x72x16xf32, #tpu.memory_space<vmem>>, %arg7: memref<2x32x128xbf16, #tpu.memory_space<vmem>>) attributes {dimension_semantics = [#tpu.dimension_semantics<parallel>], iteration_bounds = array<i64: 1>, scalar_prefetch = 0 : i64, scratch_operands = 1 : i64, tpu.core_type = #tpu.core_type<tc>, window_params = [{transform_indices = @transform_0, window_bounds = array<i64: 2, 72, 16>}, {pipeline_mode = #tpu.pipeline_mode<synchronous>, transform_indices = @transform_1, window_bounds = array<i64: 3, 384, 128>}, {pipeline_mode = #tpu.pipeline_mode<synchronous>, transform_indices = @transform_2, window_bounds = array<i64: 3, 1, 128>}, {pipeline_mode = #tpu.pipeline_mode<synchronous>, transform_indices = @transform_3, window_bounds = array<i64: 3, 384, 128>}, {pipeline_mode = #tpu.pipeline_mode<synchronous>, transform_indices = @transform_4, window_bounds = array<i64: 3, 1, 128>}, {transform_indices = @transform_5, window_bounds = array<i64: 2, 72, 16>}]} {
    %cst = arith.constant 0.000000e+00 : bf16
    %0 = vector.broadcast %cst : bf16 to vector<2x16x128xbf16>
    %c0 = arith.constant 0 : index
    %c0_0 = arith.constant 0 : index
    %c0_1 = arith.constant 0 : index
    %1 = vector.load %arg7[%c0, %c0_0, %c0_1] : memref<2x32x128xbf16, #tpu.memory_space<vmem>>, vector<2x16x128xbf16>
    tpu.vector_store %arg7[%c0, %c0_0, %c0_1], %0 {strides = array<i32>} : memref<2x32x128xbf16, #tpu.memory_space<vmem>>, vector<2x16x128xbf16>,
    %c0_2 = arith.constant 0 : index
    %c0_3 = arith.constant 0 : index
    %c0_4 = arith.constant 0 : index
    %2 = vector.load %arg1[%c0_2, %c0_3, %c0_4] : memref<2x72x16xf32, #tpu.memory_space<vmem>>, vector<1x72x16xf32>
    %3 = vector.shape_cast %2 : vector<1x72x16xf32> to vector<72x16xf32>
    %cst_5 = arith.constant 0.000000e+00 : f32
    %4 = vector.broadcast %cst_5 : f32 to vector<56x16xf32>
    %5 = tpu.concatenate %3, %4 in 0 : vector<72x16xf32>, vector<56x16xf32> -> vector<128x16xf32>
    %6 = tpu.transpose %5, [1, 0] : vector<128x16xf32> -> vector<16x128xf32>
    %c1 = arith.constant 1 : index
    %c0_6 = arith.constant 0 : index
    %c0_7 = arith.constant 0 : index
    %7 = vector.load %arg1[%c1, %c0_6, %c0_7] : memref<2x72x16xf32, #tpu.memory_space<vmem>>, vector<1x72x16xf32>
    %8 = vector.shape_cast %7 : vector<1x72x16xf32> to vector<72x16xf32>
    %cst_8 = arith.constant 0.000000e+00 : f32
    %9 = vector.broadcast %cst_8 : f32 to vector<56x16xf32>
    %10 = tpu.concatenate %8, %9 in 0 : vector<72x16xf32>, vector<56x16xf32> -> vector<128x16xf32>
    %11 = tpu.transpose %10, [1, 0] : vector<128x16xf32> -> vector<16x128xf32>
    %12 = tpu.concatenate %6, %11 in 0 : vector<16x128xf32>, vector<16x128xf32> -> vector<32x128xf32>
    %c0_9 = arith.constant 0 : index
    %c0_10 = arith.constant 0 : index
    %c0_11 = arith.constant 0 : index
    %13 = vector.load %arg2[%c0_9, %c0_10, %c0_11] : memref<3x384x128xbf16, #tpu.memory_space<vmem>>, vector<1x384x128xbf16>
    %14 = vector.shape_cast %13 : vector<1x384x128xbf16> to vector<384x128xbf16>
    %c0_12 = arith.constant 0 : index
    %c0_13 = arith.constant 0 : index
    %c0_14 = arith.constant 0 : index
    %15 = vector.load %arg3[%c0_12, %c0_13, %c0_14] : memref<3x1x128xf32, #tpu.memory_space<vmem>>, vector<1x1x128xf32>
    %16 = vector.shape_cast %15 : vector<1x1x128xf32> to vector<1x128xf32>
    %17 = arith.truncf %12 : vector<32x128xf32> to vector<32x128xbf16>
    %18 = vector.shape_cast %17 : vector<32x128xbf16> to vector<2x16x128xbf16>
    %c0_15 = arith.constant 0 : index
    %c16 = arith.constant 16 : index
    %c0_16 = arith.constant 0 : index
    %19 = vector.load %arg7[%c0_15, %c16, %c0_16] : memref<2x32x128xbf16, #tpu.memory_space<vmem>>, vector<2x16x128xbf16>
    tpu.vector_store %arg7[%c0_15, %c16, %c0_16], %18 {strides = array<i32>} : memref<2x32x128xbf16, #tpu.memory_space<vmem>>, vector<2x16x128xbf16>,
    %c0_17 = arith.constant 0 : index
    %c14 = arith.constant 14 : index
    %c0_18 = arith.constant 0 : index
    %20 = vector.load %arg7[%c0_17, %c14, %c0_18] : memref<2x32x128xbf16, #tpu.memory_space<vmem>>, vector<2x16x128xbf16>
    %21 = vector.shape_cast %20 : vector<2x16x128xbf16> to vector<32x128xbf16>
    %c0_19 = arith.constant 0 : index
    %c15 = arith.constant 15 : index
    %c0_20 = arith.constant 0 : index
    %22 = vector.load %arg7[%c0_19, %c15, %c0_20] : memref<2x32x128xbf16, #tpu.memory_space<vmem>>, vector<2x16x128xbf16>
    %23 = vector.shape_cast %22 : vector<2x16x128xbf16> to vector<32x128xbf16>
    %24 = tpu.concatenate %21, %23, %17 in 1 : vector<32x128xbf16>, vector<32x128xbf16>, vector<32x128xbf16> -> vector<32x384xbf16>
    %cst_21 = arith.constant dense<0.000000e+00> : vector<32x128xf32>
    %25 = tpu.matmul %24, %14, %cst_21 {dimension_numbers = #tpu.dot_dimension_numbers<[1], [0], [0], [1], [0, 0, 1, 1], [], []>} : vector<32x384xbf16>, vector<384x128xbf16>, vector<32x128xf32> -> vector<32x128xf32>
    %26 = vector.broadcast %16 : vector<1x128xf32> to vector<32x128xf32>
    %27 = arith.addf %25, %26 : vector<32x128xf32>
    %cst_22 = arith.constant 0.000000e+00 : f32
    %28 = vector.broadcast %cst_22 : f32 to vector<32x128xf32>
    %29 = arith.maximumf %27, %28 : vector<32x128xf32>
    %c0_23 = arith.constant 0 : index
    %c0_24 = arith.constant 0 : index
    %c0_25 = arith.constant 0 : index
    %30 = vector.load %arg4[%c0_23, %c0_24, %c0_25] : memref<3x384x128xbf16, #tpu.memory_space<vmem>>, vector<1x384x128xbf16>
    %31 = vector.shape_cast %30 : vector<1x384x128xbf16> to vector<384x128xbf16>
    %c0_26 = arith.constant 0 : index
    %c0_27 = arith.constant 0 : index
    %c0_28 = arith.constant 0 : index
    %32 = vector.load %arg5[%c0_26, %c0_27, %c0_28] : memref<3x1x128xf32, #tpu.memory_space<vmem>>, vector<1x1x128xf32>
    %33 = vector.shape_cast %32 : vector<1x1x128xf32> to vector<1x128xf32>
    %34 = arith.truncf %29 : vector<32x128xf32> to vector<32x128xbf16>
    %35 = vector.shape_cast %34 : vector<32x128xbf16> to vector<2x16x128xbf16>
    %c0_29 = arith.constant 0 : index
    %c16_30 = arith.constant 16 : index
    %c0_31 = arith.constant 0 : index
    %36 = vector.load %arg7[%c0_29, %c16_30, %c0_31] : memref<2x32x128xbf16, #tpu.memory_space<vmem>>, vector<2x16x128xbf16>
    tpu.vector_store %arg7[%c0_29, %c16_30, %c0_31], %35 {strides = array<i32>} : memref<2x32x128xbf16, #tpu.memory_space<vmem>>, vector<2x16x128xbf16>,
    %c0_32 = arith.constant 0 : index
    %c14_33 = arith.constant 14 : index
    %c0_34 = arith.constant 0 : index
    %37 = vector.load %arg7[%c0_32, %c14_33, %c0_34] : memref<2x32x128xbf16, #tpu.memory_space<vmem>>, vector<2x16x128xbf16>
    %38 = vector.shape_cast %37 : vector<2x16x128xbf16> to vector<32x128xbf16>
    %c0_35 = arith.constant 0 : index
    %c15_36 = arith.constant 15 : index
    %c0_37 = arith.constant 0 : index
    %39 = vector.load %arg7[%c0_35, %c15_36, %c0_37] : memref<2x32x128xbf16, #tpu.memory_space<vmem>>, vector<2x16x128xbf16>
    %40 = vector.shape_cast %39 : vector<2x16x128xbf16> to vector<32x128xbf16>
    %41 = tpu.concatenate %38, %40, %34 in 1 : vector<32x128xbf16>, vector<32x128xbf16>, vector<32x128xbf16> -> vector<32x384xbf16>
    %cst_38 = arith.constant dense<0.000000e+00> : vector<32x128xf32>
    %42 = tpu.matmul %41, %31, %cst_38 {dimension_numbers = #tpu.dot_dimension_numbers<[1], [0], [0], [1], [0, 0, 1, 1], [], []>} : vector<32x384xbf16>, vector<384x128xbf16>, vector<32x128xf32> -> vector<32x128xf32>
    %43 = vector.broadcast %33 : vector<1x128xf32> to vector<32x128xf32>
    %44 = arith.addf %42, %43 : vector<32x128xf32>
    %cst_39 = arith.constant 0.000000e+00 : f32
    %45 = vector.broadcast %cst_39 : f32 to vector<32x128xf32>
    %46 = arith.maximumf %44, %45 : vector<32x128xf32>
    %47 = arith.addf %46, %12 : vector<32x128xf32>
    %cst_40 = arith.constant 0.000000e+00 : f32
    %48 = vector.broadcast %cst_40 : f32 to vector<32x128xf32>
    %49 = arith.maximumf %47, %48 : vector<32x128xf32>
    %c1_41 = arith.constant 1 : index
    %c0_42 = arith.constant 0 : index
    %c0_43 = arith.constant 0 : index
    %50 = vector.load %arg2[%c1_41, %c0_42, %c0_43] : memref<3x384x128xbf16, #tpu.memory_space<vmem>>, vector<1x384x128xbf16>
    %51 = vector.shape_cast %50 : vector<1x384x128xbf16> to vector<384x128xbf16>
    %c1_44 = arith.constant 1 : index
    %c0_45 = arith.constant 0 : index
    %c0_46 = arith.constant 0 : index
    %52 = vector.load %arg3[%c1_44, %c0_45, %c0_46] : memref<3x1x128xf32, #tpu.memory_space<vmem>>, vector<1x1x128xf32>
    %53 = vector.shape_cast %52 : vector<1x1x128xf32> to vector<1x128xf32>
    %54 = arith.truncf %49 : vector<32x128xf32> to vector<32x128xbf16>
    %55 = vector.shape_cast %54 : vector<32x128xbf16> to vector<2x16x128xbf16>
    %c0_47 = arith.constant 0 : index
    %c16_48 = arith.constant 16 : index
    %c0_49 = arith.constant 0 : index
    %56 = vector.load %arg7[%c0_47, %c16_48, %c0_49] : memref<2x32x128xbf16, #tpu.memory_space<vmem>>, vector<2x16x128xbf16>
    tpu.vector_store %arg7[%c0_47, %c16_48, %c0_49], %55 {strides = array<i32>} : memref<2x32x128xbf16, #tpu.memory_space<vmem>>, vector<2x16x128xbf16>,
    %c0_50 = arith.constant 0 : index
    %c12 = arith.constant 12 : index
    %c0_51 = arith.constant 0 : index
    %57 = vector.load %arg7[%c0_50, %c12, %c0_51] : memref<2x32x128xbf16, #tpu.memory_space<vmem>>, vector<2x16x128xbf16>
    %58 = vector.shape_cast %57 : vector<2x16x128xbf16> to vector<32x128xbf16>
    %c0_52 = arith.constant 0 : index
    %c14_53 = arith.constant 14 : index
    %c0_54 = arith.constant 0 : index
    %59 = vector.load %arg7[%c0_52, %c14_53, %c0_54] : memref<2x32x128xbf16, #tpu.memory_space<vmem>>, vector<2x16x128xbf16>
    %60 = vector.shape_cast %59 : vector<2x16x128xbf16> to vector<32x128xbf16>
    %61 = tpu.concatenate %58, %60, %54 in 1 : vector<32x128xbf16>, vector<32x128xbf16>, vector<32x128xbf16> -> vector<32x384xbf16>
    %cst_55 = arith.constant dense<0.000000e+00> : vector<32x128xf32>
    %62 = tpu.matmul %61, %51, %cst_55 {dimension_numbers = #tpu.dot_dimension_numbers<[1], [0], [0], [1], [0, 0, 1, 1], [], []>} : vector<32x384xbf16>, vector<384x128xbf16>, vector<32x128xf32> -> vector<32x128xf32>
    %63 = vector.broadcast %53 : vector<1x128xf32> to vector<32x128xf32>
    %64 = arith.addf %62, %63 : vector<32x128xf32>
    %cst_56 = arith.constant 0.000000e+00 : f32
    %65 = vector.broadcast %cst_56 : f32 to vector<32x128xf32>
    %66 = arith.maximumf %64, %65 : vector<32x128xf32>
    %c1_57 = arith.constant 1 : index
    %c0_58 = arith.constant 0 : index
    %c0_59 = arith.constant 0 : index
    %67 = vector.load %arg4[%c1_57, %c0_58, %c0_59] : memref<3x384x128xbf16, #tpu.memory_space<vmem>>, vector<1x384x128xbf16>
    %68 = vector.shape_cast %67 : vector<1x384x128xbf16> to vector<384x128xbf16>
    %c1_60 = arith.constant 1 : index
    %c0_61 = arith.constant 0 : index
    %c0_62 = arith.constant 0 : index
    %69 = vector.load %arg5[%c1_60, %c0_61, %c0_62] : memref<3x1x128xf32, #tpu.memory_space<vmem>>, vector<1x1x128xf32>
    %70 = vector.shape_cast %69 : vector<1x1x128xf32> to vector<1x128xf32>
    %71 = arith.truncf %66 : vector<32x128xf32> to vector<32x128xbf16>
    %72 = vector.shape_cast %71 : vector<32x128xbf16> to vector<2x16x128xbf16>
    %c0_63 = arith.constant 0 : index
    %c16_64 = arith.constant 16 : index
    %c0_65 = arith.constant 0 : index
    %73 = vector.load %arg7[%c0_63, %c16_64, %c0_65] : memref<2x32x128xbf16, #tpu.memory_space<vmem>>, vector<2x16x128xbf16>
    tpu.vector_store %arg7[%c0_63, %c16_64, %c0_65], %72 {strides = array<i32>} : memref<2x32x128xbf16, #tpu.memory_space<vmem>>, vector<2x16x128xbf16>,
    %c0_66 = arith.constant 0 : index
    %c12_67 = arith.constant 12 : index
    %c0_68 = arith.constant 0 : index
    %74 = vector.load %arg7[%c0_66, %c12_67, %c0_68] : memref<2x32x128xbf16, #tpu.memory_space<vmem>>, vector<2x16x128xbf16>
    %75 = vector.shape_cast %74 : vector<2x16x128xbf16> to vector<32x128xbf16>
    %c0_69 = arith.constant 0 : index
    %c14_70 = arith.constant 14 : index
    %c0_71 = arith.constant 0 : index
    %76 = vector.load %arg7[%c0_69, %c14_70, %c0_71] : memref<2x32x128xbf16, #tpu.memory_space<vmem>>, vector<2x16x128xbf16>
    %77 = vector.shape_cast %76 : vector<2x16x128xbf16> to vector<32x128xbf16>
    %78 = tpu.concatenate %75, %77, %71 in 1 : vector<32x128xbf16>, vector<32x128xbf16>, vector<32x128xbf16> -> vector<32x384xbf16>
    %cst_72 = arith.constant dense<0.000000e+00> : vector<32x128xf32>
    %79 = tpu.matmul %78, %68, %cst_72 {dimension_numbers = #tpu.dot_dimension_numbers<[1], [0], [0], [1], [0, 0, 1, 1], [], []>} : vector<32x384xbf16>, vector<384x128xbf16>, vector<32x128xf32> -> vector<32x128xf32>
    %80 = vector.broadcast %70 : vector<1x128xf32> to vector<32x128xf32>
    %81 = arith.addf %79, %80 : vector<32x128xf32>
    %cst_73 = arith.constant 0.000000e+00 : f32
    %82 = vector.broadcast %cst_73 : f32 to vector<32x128xf32>
    %83 = arith.maximumf %81, %82 : vector<32x128xf32>
    %84 = arith.addf %83, %49 : vector<32x128xf32>
    %cst_74 = arith.constant 0.000000e+00 : f32
    %85 = vector.broadcast %cst_74 : f32 to vector<32x128xf32>
    %86 = arith.maximumf %84, %85 : vector<32x128xf32>
    %c2 = arith.constant 2 : index
    %c0_75 = arith.constant 0 : index
    %c0_76 = arith.constant 0 : index
    %87 = vector.load %arg2[%c2, %c0_75, %c0_76] : memref<3x384x128xbf16, #tpu.memory_space<vmem>>, vector<1x384x128xbf16>
    %88 = vector.shape_cast %87 : vector<1x384x128xbf16> to vector<384x128xbf16>
    %c2_77 = arith.constant 2 : index
    %c0_78 = arith.constant 0 : index
    %c0_79 = arith.constant 0 : index
    %89 = vector.load %arg3[%c2_77, %c0_78, %c0_79] : memref<3x1x128xf32, #tpu.memory_space<vmem>>, vector<1x1x128xf32>
    %90 = vector.shape_cast %89 : vector<1x1x128xf32> to vector<1x128xf32>
    %91 = arith.truncf %86 : vector<32x128xf32> to vector<32x128xbf16>
    %92 = vector.shape_cast %91 : vector<32x128xbf16> to vector<2x16x128xbf16>
    %c0_80 = arith.constant 0 : index
    %c16_81 = arith.constant 16 : index
    %c0_82 = arith.constant 0 : index
    %93 = vector.load %arg7[%c0_80, %c16_81, %c0_82] : memref<2x32x128xbf16, #tpu.memory_space<vmem>>, vector<2x16x128xbf16>
    tpu.vector_store %arg7[%c0_80, %c16_81, %c0_82], %92 {strides = array<i32>} : memref<2x32x128xbf16, #tpu.memory_space<vmem>>, vector<2x16x128xbf16>,
    %c0_83 = arith.constant 0 : index
    %c8 = arith.constant 8 : index
    %c0_84 = arith.constant 0 : index
    %94 = vector.load %arg7[%c0_83, %c8, %c0_84] : memref<2x32x128xbf16, #tpu.memory_space<vmem>>, vector<2x16x128xbf16>
    %95 = vector.shape_cast %94 : vector<2x16x128xbf16> to vector<32x128xbf16>
    %c0_85 = arith.constant 0 : index
    %c12_86 = arith.constant 12 : index
    %c0_87 = arith.constant 0 : index
    %96 = vector.load %arg7[%c0_85, %c12_86, %c0_87] : memref<2x32x128xbf16, #tpu.memory_space<vmem>>, vector<2x16x128xbf16>
    %97 = vector.shape_cast %96 : vector<2x16x128xbf16> to vector<32x128xbf16>
    %98 = tpu.concatenate %95, %97, %91 in 1 : vector<32x128xbf16>, vector<32x128xbf16>, vector<32x128xbf16> -> vector<32x384xbf16>
    %cst_88 = arith.constant dense<0.000000e+00> : vector<32x128xf32>
    %99 = tpu.matmul %98, %88, %cst_88 {dimension_numbers = #tpu.dot_dimension_numbers<[1], [0], [0], [1], [0, 0, 1, 1], [], []>} : vector<32x384xbf16>, vector<384x128xbf16>, vector<32x128xf32> -> vector<32x128xf32>
    %100 = vector.broadcast %90 : vector<1x128xf32> to vector<32x128xf32>
    %101 = arith.addf %99, %100 : vector<32x128xf32>
    %cst_89 = arith.constant 0.000000e+00 : f32
    %102 = vector.broadcast %cst_89 : f32 to vector<32x128xf32>
    %103 = arith.maximumf %101, %102 : vector<32x128xf32>
    %c2_90 = arith.constant 2 : index
    %c0_91 = arith.constant 0 : index
    %c0_92 = arith.constant 0 : index
    %104 = vector.load %arg4[%c2_90, %c0_91, %c0_92] : memref<3x384x128xbf16, #tpu.memory_space<vmem>>, vector<1x384x128xbf16>
    %105 = vector.shape_cast %104 : vector<1x384x128xbf16> to vector<384x128xbf16>
    %c2_93 = arith.constant 2 : index
    %c0_94 = arith.constant 0 : index
    %c0_95 = arith.constant 0 : index
    %106 = vector.load %arg5[%c2_93, %c0_94, %c0_95] : memref<3x1x128xf32, #tpu.memory_space<vmem>>, vector<1x1x128xf32>
    %107 = vector.shape_cast %106 : vector<1x1x128xf32> to vector<1x128xf32>
    %108 = arith.truncf %103 : vector<32x128xf32> to vector<32x128xbf16>
    %109 = vector.shape_cast %108 : vector<32x128xbf16> to vector<2x16x128xbf16>
    %c0_96 = arith.constant 0 : index
    %c16_97 = arith.constant 16 : index
    %c0_98 = arith.constant 0 : index
    %110 = vector.load %arg7[%c0_96, %c16_97, %c0_98] : memref<2x32x128xbf16, #tpu.memory_space<vmem>>, vector<2x16x128xbf16>
    tpu.vector_store %arg7[%c0_96, %c16_97, %c0_98], %109 {strides = array<i32>} : memref<2x32x128xbf16, #tpu.memory_space<vmem>>, vector<2x16x128xbf16>,
    %c0_99 = arith.constant 0 : index
    %c8_100 = arith.constant 8 : index
    %c0_101 = arith.constant 0 : index
    %111 = vector.load %arg7[%c0_99, %c8_100, %c0_101] : memref<2x32x128xbf16, #tpu.memory_space<vmem>>, vector<2x16x128xbf16>
    %112 = vector.shape_cast %111 : vector<2x16x128xbf16> to vector<32x128xbf16>
    %c0_102 = arith.constant 0 : index
    %c12_103 = arith.constant 12 : index
    %c0_104 = arith.constant 0 : index
    %113 = vector.load %arg7[%c0_102, %c12_103, %c0_104] : memref<2x32x128xbf16, #tpu.memory_space<vmem>>, vector<2x16x128xbf16>
    %114 = vector.shape_cast %113 : vector<2x16x128xbf16> to vector<32x128xbf16>
    %115 = tpu.concatenate %112, %114, %108 in 1 : vector<32x128xbf16>, vector<32x128xbf16>, vector<32x128xbf16> -> vector<32x384xbf16>
    %cst_105 = arith.constant dense<0.000000e+00> : vector<32x128xf32>
    %116 = tpu.matmul %115, %105, %cst_105 {dimension_numbers = #tpu.dot_dimension_numbers<[1], [0], [0], [1], [0, 0, 1, 1], [], []>} : vector<32x384xbf16>, vector<384x128xbf16>, vector<32x128xf32> -> vector<32x128xf32>
    %117 = vector.broadcast %107 : vector<1x128xf32> to vector<32x128xf32>
    %118 = arith.addf %116, %117 : vector<32x128xf32>
    %cst_106 = arith.constant 0.000000e+00 : f32
    %119 = vector.broadcast %cst_106 : f32 to vector<32x128xf32>
    %120 = arith.maximumf %118, %119 : vector<32x128xf32>
    %121 = arith.addf %120, %86 : vector<32x128xf32>
    %cst_107 = arith.constant 0.000000e+00 : f32
    %122 = vector.broadcast %cst_107 : f32 to vector<32x128xf32>
    %123 = arith.maximumf %121, %122 : vector<32x128xf32>
    %124 = vector.extract_strided_slice %123 {offsets = [0, 0], sizes = [16, 128], strides = [1, 1]} : vector<32x128xf32> to vector<16x128xf32>
    %125 = tpu.transpose %124, [1, 0] : vector<16x128xf32> -> vector<128x16xf32>
    %126 = vector.extract_strided_slice %125 {offsets = [0, 0], sizes = [72, 16], strides = [1, 1]} : vector<128x16xf32> to vector<72x16xf32>
    %c0_108 = arith.constant 0 : index
    %c0_109 = arith.constant 0 : index
    %c0_110 = arith.constant 0 : index
    %127 = vector.load %arg6[%c0_108, %c0_109, %c0_110] : memref<2x72x16xf32, #tpu.memory_space<vmem>>, vector<1x72x16xf32>
    %128 = vector.shape_cast %127 : vector<1x72x16xf32> to vector<72x16xf32>
    %129 = vector.shape_cast %126 : vector<72x16xf32> to vector<1x72x16xf32>
    tpu.vector_store %arg6[%c0_108, %c0_109, %c0_110], %129 {strides = array<i32>} : memref<2x72x16xf32, #tpu.memory_space<vmem>>, vector<1x72x16xf32>,
    %130 = vector.extract_strided_slice %123 {offsets = [16, 0], sizes = [16, 128], strides = [1, 1]} : vector<32x128xf32> to vector<16x128xf32>
    %131 = tpu.transpose %130, [1, 0] : vector<16x128xf32> -> vector<128x16xf32>
    %132 = vector.extract_strided_slice %131 {offsets = [0, 0], sizes = [72, 16], strides = [1, 1]} : vector<128x16xf32> to vector<72x16xf32>
    %c1_111 = arith.constant 1 : index
    %c0_112 = arith.constant 0 : index
    %c0_113 = arith.constant 0 : index
    %133 = vector.load %arg6[%c1_111, %c0_112, %c0_113] : memref<2x72x16xf32, #tpu.memory_space<vmem>>, vector<1x72x16xf32>
    %134 = vector.shape_cast %133 : vector<1x72x16xf32> to vector<72x16xf32>
    %135 = vector.shape_cast %132 : vector<72x16xf32> to vector<1x72x16xf32>
    tpu.vector_store %arg6[%c1_111, %c0_112, %c0_113], %135 {strides = array<i32>} : memref<2x72x16xf32, #tpu.memory_space<vmem>>, vector<1x72x16xf32>,
    return
  }
  func.func @transform_0(%arg0: i32) -> (i32, i32, i32) {
    %c0_i32 = arith.constant 0 : i32
    %c0_i32_0 = arith.constant 0 : i32
    %c0_i32_1 = arith.constant 0 : i32
    return %arg0, %c0_i32, %c0_i32_0 : i32, i32, i32
  }
  func.func @transform_1(%arg0: i32) -> (i32, i32, i32) {
    %c0_i32 = arith.constant 0 : i32
    %c0_i32_0 = arith.constant 0 : i32
    %c0_i32_1 = arith.constant 0 : i32
    %c0_i32_2 = arith.constant 0 : i32
    return %c0_i32, %c0_i32_0, %c0_i32_1 : i32, i32, i32
  }
  func.func @transform_2(%arg0: i32) -> (i32, i32, i32) {
    %c0_i32 = arith.constant 0 : i32
    %c0_i32_0 = arith.constant 0 : i32
    %c0_i32_1 = arith.constant 0 : i32
    %c0_i32_2 = arith.constant 0 : i32
    return %c0_i32, %c0_i32_0, %c0_i32_1 : i32, i32, i32
  }
  func.func @transform_3(%arg0: i32) -> (i32, i32, i32) {
    %c0_i32 = arith.constant 0 : i32
    %c0_i32_0 = arith.constant 0 : i32
    %c0_i32_1 = arith.constant 0 : i32
    %c0_i32_2 = arith.constant 0 : i32
    return %c0_i32, %c0_i32_0, %c0_i32_1 : i32, i32, i32
  }
  func.func @transform_4(%arg0: i32) -> (i32, i32, i32) {
    %c0_i32 = arith.constant 0 : i32
    %c0_i32_0 = arith.constant 0 : i32
    %c0_i32_1 = arith.constant 0 : i32
    %c0_i32_2 = arith.constant 0 : i32
    return %c0_i32, %c0_i32_0, %c0_i32_1 : i32, i32, i32
  }
  func.func @transform_5(%arg0: i32) -> (i32, i32, i32) {
    %c0_i32 = arith.constant 0 : i32
    %c0_i32_0 = arith.constant 0 : i32
    %c0_i32_1 = arith.constant 0 : i32
    return %arg0, %c0_i32, %c0_i32_0 : i32, i32, i32
  }
}

</mosaic_0001>

<llo_original>
// kernel: temporal_conv_net.1
$region0: #{temporal_conv_net.1}
  #allocation0 [shape = 'u32[]', space=smem, size = 0x4, offset = 0x4, fixed_abs, tag = 'smem constant byte address 0x4 - core index']
  #allocation1 [shape = 'u32[144,128]{1,0:T(1,128)}', space=vmem, size = 0x12000, scoped, tag = 'internal scratch']
  #allocation2 [shape = 'bf16[2,32,128]{2,1,0:T(16,128)(2,1)}', space=vmem, size = 0x4000, scoped, tag = 'scratch operand']
  %s0 = inlined_call_operand.vmem [shape: f32[2,72,16], index: 0, kind: input, shape index: {}]
  %s1 = inlined_call_operand.hbm [shape: bf16[3,384,128], index: 1, kind: input, shape index: {}]
  %s2 = inlined_call_operand.vmem [shape: f32[3,1,128], index: 2, kind: input, shape index: {}]
  %s3 = inlined_call_operand.hbm [shape: bf16[3,384,128], index: 3, kind: input, shape index: {}]
  %s4 = inlined_call_operand.vmem [shape: f32[3,1,128], index: 4, kind: input, shape index: {}]
  %s5 = inlined_call_operand.vmem [shape: f32[2,72,16], index: 5, kind: output, shape index: {}]
  %s6 = sld [smem:[#allocation0]]
  $region38: #{temporal_conv_net.1} parent=0
    _
  %s8 = ssub.s32 1, %s6
  %s9 = scalar_select 0, %s8, %s6
  $region1: #{temporal_conv_net.1} parent=0
    #allocation3 [shape = 'u8[294912]{0}', space=vmem, size = 0x48000, scoped, tag = 'input window, operand 1, single buffered']
    #allocation4 [shape = 's32[1]{0}', space=sflag, size = 0x4, scoped, tag = 'scoped memory for temporal_conv_net.1']
    #allocation5 [shape = 'u8[294912]{0}', space=vmem, size = 0x48000, scoped, tag = 'input window, operand 3, single buffered']
    #allocation6 [shape = 's32[1]{0}', space=sflag, size = 0x4, scoped, tag = 'scoped memory for temporal_conv_net.1']
    %10 = vsyncpa [#allocation4], 0
    %11 = vsyncpa [#allocation6], 0
    // Predicated region
    $region2: #{temporal_conv_net.1} parent=1 // pred_check
      _
    $region3: #{temporal_conv_net.1} parent=1 // pred_check_branch
      %13 = sbr.rel (0) target = $region5
    $region4: #{temporal_conv_net.1} parent=1 // pred_region
      _
    $region5: #{temporal_conv_net.1} parent=1 // pred_fallthru
      _
    // Predicated region
    $region6: #{temporal_conv_net.1} parent=1 // pred_check
      _
    $region7: #{temporal_conv_net.1} parent=1 // pred_check_branch
      %15 = sbr.rel (0) target = $region9
    $region8: #{temporal_conv_net.1} parent=1 // pred_region
      %s17 = ssub.s32 9216, 9216
      %18 = vsyncadd [#allocation4], %s17
      %s19 = sshll.u32 [#allocation3], 4
      %s20 = int_to_ptr.vmem [resolvable:$true] %s19
      %25 = dma.hbm_to_vmem [thread:$0]  %s1, 9216, %s20, [#allocation4], 64, 64, 4
    $region9: #{temporal_conv_net.1} parent=1 // pred_fallthru
      _
    // Predicated region
    $region10: #{temporal_conv_net.1} parent=1 // pred_check
      _
    $region11: #{temporal_conv_net.1} parent=1 // pred_check_branch
      %27 = sbr.rel (0) target = $region13
    $region12: #{temporal_conv_net.1} parent=1 // pred_region
      _
    $region13: #{temporal_conv_net.1} parent=1 // pred_fallthru
      _
    // Predicated region
    $region14: #{temporal_conv_net.1} parent=1 // pred_check
      _
    $region15: #{temporal_conv_net.1} parent=1 // pred_check_branch
      %29 = sbr.rel (0) target = $region17
    $region16: #{temporal_conv_net.1} parent=1 // pred_region
      %s31 = ssub.s32 9216, 9216
      %32 = vsyncadd [#allocation6], %s31
      %s33 = sshll.u32 [#allocation5], 4
      %s34 = int_to_ptr.vmem [resolvable:$true] %s33
      %39 = dma.hbm_to_vmem [thread:$0]  %s3, 9216, %s34, [#allocation6], 64, 64, 4
    $region17: #{temporal_conv_net.1} parent=1 // pred_fallthru
      _
    // Predicated region
    $region18: #{temporal_conv_net.1} parent=1 // pred_check
      _
    $region19: #{temporal_conv_net.1} parent=1 // pred_check_branch
      %41 = sbr.rel (0) target = $region21
    $region20: #{temporal_conv_net.1} parent=1 // pred_region
      _
    $region21: #{temporal_conv_net.1} parent=1 // pred_fallthru
      _
    // Predicated region
    $region22: #{temporal_conv_net.1} parent=1 // pred_check
      _
    $region23: #{temporal_conv_net.1} parent=1 // pred_check_branch
      %43 = sbr.rel (0) target = $region25
    $region24: #{temporal_conv_net.1} parent=1 // pred_region
      %44 = dma.done [#allocation4], 9216
    $region25: #{temporal_conv_net.1} parent=1 // pred_fallthru
      _
    // Predicated region
    $region26: #{temporal_conv_net.1} parent=1 // pred_check
      _
    $region27: #{temporal_conv_net.1} parent=1 // pred_check_branch
      %46 = sbr.rel (0) target = $region29
    $region28: #{temporal_conv_net.1} parent=1 // pred_region
      %47 = dma.done [#allocation6], 9216
    $region29: #{temporal_conv_net.1} parent=1 // pred_fallthru
      _
    %49 = vst [vmem:[#allocation2] sm:$0xff] 0
    %50 = vst [vmem:[#allocation2 + $0x10] sm:$0xff] 0
    %v51 = vld [vmem:[%s0] sm:$0xff]
    %v52 = vld [vmem:[%s0 + $0x8] sm:$0xff]
    %v53 = vld [vmem:[%s0 + $0x10] sm:$0xff]
    %v54 = vld [vmem:[%s0 + $0x18] sm:$0xff]
    %v55 = vld [vmem:[%s0 + $0x20] sm:$0xff]
    %v56 = vld [vmem:[%s0 + $0x28] sm:$0xff]
    %v57 = vld [vmem:[%s0 + $0x30] sm:$0xff]
    %v58 = vld [vmem:[%s0 + $0x38] sm:$0xff]
    %v59 = vld [vmem:[%s0 + $0x40] sm:$0xff]
    %60 = vxpose.xlu0.b32.start [1/16] %v51, 128
    %61 = vxpose.xlu0.b32.cont [2/16] %v52, 128
    %62 = vxpose.xlu0.b32.cont [3/16] %v53, 128
    %63 = vxpose.xlu0.b32.cont [4/16] %v54, 128
    %64 = vxpose.xlu0.b32.cont [5/16] %v55, 128
    %65 = vxpose.xlu0.b32.cont [6/16] %v56, 128
    %66 = vxpose.xlu0.b32.cont [7/16] %v57, 128
    %67 = vxpose.xlu0.b32.cont [8/16] %v58, 128
    %68 = vxpose.xlu0.b32.cont [9/16] %v59, 128
    %69 = vxpose.xlu0.b32.cont [10/16] 0.0, 128
    %70 = vxpose.xlu0.b32.cont [11/16] 0.0, 128
    %71 = vxpose.xlu0.b32.cont [12/16] 0.0, 128
    %72 = vxpose.xlu0.b32.cont [13/16] 0.0, 128
    %73 = vxpose.xlu0.b32.cont [14/16] 0.0, 128
    %74 = vxpose.xlu0.b32.cont [15/16] 0.0, 128
    %75 = vxpose.xlu0.b32.end [16/16] 0.0, 128
    %v76 = vpop.trf.xlu0
    %v77 = vpop.trf.xlu0
    %v78 = vpop.trf.xlu0
    %v79 = vpop.trf.xlu0
    %v80 = vpop.trf.xlu0
    %v81 = vpop.trf.xlu0
    %v82 = vpop.trf.xlu0
    %v83 = vpop.trf.xlu0
    %v84 = vpop.trf.xlu0
    %v85 = vpop.trf.xlu0
    %v86 = vpop.trf.xlu0
    %v87 = vpop.trf.xlu0
    %v88 = vpop.trf.xlu0
    %v89 = vpop.trf.xlu0
    %v90 = vpop.trf.xlu0
    %v91 = vpop.trf.xlu0
    %s92 = scalar_lea.vmem %s0, 72
    %v93 = vld [vmem:[%s92] sm:$0xff]
    %v94 = vld [vmem:[%s92 + $0x8] sm:$0xff]
    %v95 = vld [vmem:[%s92 + $0x10] sm:$0xff]
    %v96 = vld [vmem:[%s92 + $0x18] sm:$0xff]
    %v97 = vld [vmem:[%s92 + $0x20] sm:$0xff]
    %v98 = vld [vmem:[%s92 + $0x28] sm:$0xff]
    %v99 = vld [vmem:[%s92 + $0x30] sm:$0xff]
    %v100 = vld [vmem:[%s92 + $0x38] sm:$0xff]
    %v101 = vld [vmem:[%s92 + $0x40] sm:$0xff]
    %102 = vxpose.xlu0.b32.start [1/16] %v93, 128
    %103 = vxpose.xlu0.b32.cont [2/16] %v94, 128
    %104 = vxpose.xlu0.b32.cont [3/16] %v95, 128
    %105 = vxpose.xlu0.b32.cont [4/16] %v96, 128
    %106 = vxpose.xlu0.b32.cont [5/16] %v97, 128
    %107 = vxpose.xlu0.b32.cont [6/16] %v98, 128
    %108 = vxpose.xlu0.b32.cont [7/16] %v99, 128
    %109 = vxpose.xlu0.b32.cont [8/16] %v100, 128
    %110 = vxpose.xlu0.b32.cont [9/16] %v101, 128
    %111 = vxpose.xlu0.b32.cont [10/16] 0.0, 128
    %112 = vxpose.xlu0.b32.cont [11/16] 0.0, 128
    %113 = vxpose.xlu0.b32.cont [12/16] 0.0, 128
    %114 = vxpose.xlu0.b32.cont [13/16] 0.0, 128
    %115 = vxpose.xlu0.b32.cont [14/16] 0.0, 128
    %116 = vxpose.xlu0.b32.cont [15/16] 0.0, 128
    %117 = vxpose.xlu0.b32.end [16/16] 0.0, 128
    %v118 = vpop.trf.xlu0
    %v119 = vpop.trf.xlu0
    %v120 = vpop.trf.xlu0
    %v121 = vpop.trf.xlu0
    %v122 = vpop.trf.xlu0
    %v123 = vpop.trf.xlu0
    %v124 = vpop.trf.xlu0
    %v125 = vpop.trf.xlu0
    %v126 = vpop.trf.xlu0
    %v127 = vpop.trf.xlu0
    %v128 = vpop.trf.xlu0
    %v129 = vpop.trf.xlu0
    %v130 = vpop.trf.xlu0
    %v131 = vpop.trf.xlu0
    %v132 = vpop.trf.xlu0
    %v133 = vpop.trf.xlu0
    %v134 = vld [vmem:[#allocation3] sm:$0xf]
    %v135 = vld [vmem:[#allocation3 + $0x4] sm:$0xf]
    %v136 = vld [vmem:[#allocation3 + $0x8] sm:$0xf]
    %v137 = vld [vmem:[#allocation3 + $0xc] sm:$0xf]
    %v138 = vld [vmem:[#allocation3 + $0x10] sm:$0xf]
    %v139 = vld [vmem:[#allocation3 + $0x14] sm:$0xf]
    %v140 = vld [vmem:[#allocation3 + $0x18] sm:$0xf]
    %v141 = vld [vmem:[#allocation3 + $0x1c] sm:$0xf]
    %v142 = vld [vmem:[#allocation3 + $0x20] sm:$0xf]
    %v143 = vld [vmem:[#allocation3 + $0x24] sm:$0xf]
    %v144 = vld [vmem:[#allocation3 + $0x28] sm:$0xf]
    %v145 = vld [vmem:[#allocation3 + $0x2c] sm:$0xf]
    %v146 = vld [vmem:[#allocation3 + $0x30] sm:$0xf]
    %v147 = vld [vmem:[#allocation3 + $0x34] sm:$0xf]
    %v148 = vld [vmem:[#allocation3 + $0x38] sm:$0xf]
    %v149 = vld [vmem:[#allocation3 + $0x3c] sm:$0xf]
    %v150 = vld [vmem:[#allocation3 + $0x40] sm:$0xf]
    %v151 = vld [vmem:[#allocation3 + $0x44] sm:$0xf]
    %v152 = vld [vmem:[#allocation3 + $0x48] sm:$0xf]
    %v153 = vld [vmem:[#allocation3 + $0x4c] sm:$0xf]
    %v154 = vld [vmem:[#allocation3 + $0x50] sm:$0xf]
    %v155 = vld [vmem:[#allocation3 + $0x54] sm:$0xf]
    %v156 = vld [vmem:[#allocation3 + $0x58] sm:$0xf]
    %v157 = vld [vmem:[#allocation3 + $0x5c] sm:$0xf]
    %v158 = vld [vmem:[#allocation3 + $0x60] sm:$0xf]
    %v159 = vld [vmem:[#allocation3 + $0x64] sm:$0xf]
    %v160 = vld [vmem:[#allocation3 + $0x68] sm:$0xf]
    %v161 = vld [vmem:[#allocation3 + $0x6c] sm:$0xf]
    %v162 = vld [vmem:[#allocation3 + $0x70] sm:$0xf]
    %v163 = vld [vmem:[#allocation3 + $0x74] sm:$0xf]
    %v164 = vld [vmem:[#allocation3 + $0x78] sm:$0xf]
    %v165 = vld [vmem:[#allocation3 + $0x7c] sm:$0xf]
    %v166 = vld [vmem:[#allocation3 + $0x80] sm:$0xf]
    %v167 = vld [vmem:[#allocation3 + $0x84] sm:$0xf]
    %v168 = vld [vmem:[#allocation3 + $0x88] sm:$0xf]
    %v169 = vld [vmem:[#allocation3 + $0x8c] sm:$0xf]
    %v170 = vld [vmem:[#allocation3 + $0x90] sm:$0xf]
    %v171 = vld [vmem:[#allocation3 + $0x94] sm:$0xf]
    %v172 = vld [vmem:[#allocation3 + $0x98] sm:$0xf]
    %v173 = vld [vmem:[#allocation3 + $0x9c] sm:$0xf]
    %v174 = vld [vmem:[#allocation3 + $0xa0] sm:$0xf]
    %v175 = vld [vmem:[#allocation3 + $0xa4] sm:$0xf]
    %v176 = vld [vmem:[#allocation3 + $0xa8] sm:$0xf]
    %v177 = vld [vmem:[#allocation3 + $0xac] sm:$0xf]
    %v178 = vld [vmem:[#allocation3 + $0xb0] sm:$0xf]
    %v179 = vld [vmem:[#allocation3 + $0xb4] sm:$0xf]
    %v180 = vld [vmem:[#allocation3 + $0xb8] sm:$0xf]
    %v181 = vld [vmem:[#allocation3 + $0xbc] sm:$0xf]
    %v182 = vld [vmem:[%s2] sm:$0x1]
    %v183 = vpack.c.bf16 %v77, %v76
    %v184 = vpack.c.bf16 %v119, %v118
    %185 = vst [vmem:[#allocation2 + $0x8] sm:$0xff] %v183
    %186 = vst [vmem:[#allocation2 + $0x18] sm:$0xff] %v184
    %v187 = vld [vmem:[#allocation2] sm:$0x80]
    %v188 = vld [vmem:[#allocation2 + $0x8] sm:$0x7f]
    %v189 = vld [vmem:[#allocation2 + $0x10] sm:$0x80]
    %v190 = vld [vmem:[#allocation2 + $0x18] sm:$0x7f]
    %vm195 = vcmask 1040384
    %v196 = vrot.slane %v187, 7
    %v197 = vrot.slane %v188, 7
    %v198 = vsel %vm195, %v196, %v197
    %v199 = vrot.slane %v189, 7
    %v200 = vrot.slane %v190, 7
    %v201 = vsel %vm195, %v199, %v200
    %v204 = vld [vmem:[#allocation2 + $0x8] sm:$0xff]
    %v205 = vld [vmem:[#allocation2 + $0x18] sm:$0xff]
    %vm206 = vsmask.f32 256
    %v208 = vshrl.u32 %v187, 16
    %v210 = vrot.slane %v208, 7
    %v212 = vshrl.u32 %v204, 16
    %v214 = vrot.slane %v212, 7
    %v215 = vshll.u32 %v204, 16
    %v217 = vor.u32 %v214, %v215
    %v218 = vsel %vm206, %v210, %v217
    %v220 = vshrl.u32 %v189, 16
    %v222 = vrot.slane %v220, 7
    %v224 = vshrl.u32 %v205, 16
    %v226 = vrot.slane %v224, 7
    %v227 = vshll.u32 %v205, 16
    %v229 = vor.u32 %v226, %v227
    %v230 = vsel %vm206, %v222, %v229
    %v234 = vlaneseq
    %v235 = vshrl.u32 %v234, 7
    %v236 = vsub.s32 0, %v235
    %v237 = vrot.slane %v182, %v236
    %v287 = vunpack.c.l.b16 %v134
    %v288 = vunpack.c.l.b16 %v135
    %v289 = vunpack.c.l.b16 %v136
    %v290 = vunpack.c.l.b16 %v137
    %v291 = vunpack.c.l.b16 %v138
    %v292 = vunpack.c.l.b16 %v139
    %v293 = vunpack.c.l.b16 %v140
    %v294 = vunpack.c.l.b16 %v141
    %v295 = vunpack.c.l.b16 %v142
    %v296 = vunpack.c.l.b16 %v143
    %v297 = vunpack.c.l.b16 %v144
    %v298 = vunpack.c.l.b16 %v145
    %v299 = vunpack.c.l.b16 %v146
    %v300 = vunpack.c.l.b16 %v147
    %v301 = vunpack.c.l.b16 %v148
    %v302 = vunpack.c.l.b16 %v149
    %v303 = vunpack.c.l.b16 %v150
    %v304 = vunpack.c.l.b16 %v151
    %v305 = vunpack.c.l.b16 %v152
    %v306 = vunpack.c.l.b16 %v153
    %v307 = vunpack.c.l.b16 %v154
    %v308 = vunpack.c.l.b16 %v155
    %v309 = vunpack.c.l.b16 %v156
    %v310 = vunpack.c.l.b16 %v157
    %v311 = vunpack.c.l.b16 %v158
    %v312 = vunpack.c.l.b16 %v159
    %v313 = vunpack.c.l.b16 %v160
    %v314 = vunpack.c.l.b16 %v161
    %v315 = vunpack.c.l.b16 %v162
    %v316 = vunpack.c.l.b16 %v163
    %v317 = vunpack.c.l.b16 %v164
    %v318 = vunpack.c.l.b16 %v165
    %v319 = vunpack.c.l.b16 %v166
    %v320 = vunpack.c.l.b16 %v167
    %v321 = vunpack.c.l.b16 %v168
    %v322 = vunpack.c.l.b16 %v169
    %v323 = vunpack.c.l.b16 %v170
    %v324 = vunpack.c.l.b16 %v171
    %v325 = vunpack.c.l.b16 %v172
    %v326 = vunpack.c.l.b16 %v173
    %v327 = vunpack.c.l.b16 %v174
    %v328 = vunpack.c.l.b16 %v175
    %v329 = vunpack.c.l.b16 %v176
    %v330 = vunpack.c.l.b16 %v177
    %v331 = vunpack.c.l.b16 %v178
    %v332 = vunpack.c.l.b16 %v179
    %v333 = vunpack.c.l.b16 %v180
    %v334 = vunpack.c.l.b16 %v181
    %v335 = vpack.c.b16 %v288, %v287
    %v336 = vpack.c.b16 %v290, %v289
    %v337 = vpack.c.b16 %v292, %v291
    %v338 = vpack.c.b16 %v294, %v293
    %v339 = vpack.c.b16 %v296, %v295
    %v340 = vpack.c.b16 %v298, %v297
    %v341 = vpack.c.b16 %v300, %v299
    %v342 = vpack.c.b16 %v302, %v301
    %v343 = vpack.c.b16 %v304, %v303
    %v344 = vpack.c.b16 %v306, %v305
    %v345 = vpack.c.b16 %v308, %v307
    %v346 = vpack.c.b16 %v310, %v309
    %v347 = vpack.c.b16 %v312, %v311
    %v348 = vpack.c.b16 %v314, %v313
    %v349 = vpack.c.b16 %v316, %v315
    %v350 = vpack.c.b16 %v318, %v317
    %v351 = vpack.c.b16 %v320, %v319
    %v352 = vpack.c.b16 %v322, %v321
    %v353 = vpack.c.b16 %v324, %v323
    %v354 = vpack.c.b16 %v326, %v325
    %v355 = vpack.c.b16 %v328, %v327
    %v356 = vpack.c.b16 %v330, %v329
    %v357 = vpack.c.b16 %v332, %v331
    %v358 = vpack.c.b16 %v334, %v333
    %383 = vmatprep.subr.bf16.mxu0 0
    %384 = vmatpush1.bf16.msra.mxu0 %v335
    %385 = vmatprep.subr.bf16.mxu0 0
    %386 = vmatpush1.bf16.msra.mxu0 %v336
    %387 = vmatprep.subr.bf16.mxu0 0
    %388 = vmatpush1.bf16.msra.mxu0 %v337
    %389 = vmatprep.subr.bf16.mxu0 0
    %390 = vmatpush1.bf16.msra.mxu0 %v338
    %391 = vmatprep.subr.bf16.mxu0 0
    %392 = vmatpush1.bf16.msra.mxu0 %v339
    %393 = vmatprep.subr.bf16.mxu0 0
    %394 = vmatpush1.bf16.msra.mxu0 %v340
    %395 = vmatprep.subr.bf16.mxu0 0
    %396 = vmatpush1.bf16.msra.mxu0 %v341
    %397 = vmatprep.subr.bf16.mxu0 0
    %398 = vmatpush1.bf16.msra.mxu0 %v342
    %399 = vmatprep.subr.bf16.mxu0 0
    %400 = vmatpush1.bf16.msra.mxu0 %v343
    %401 = vmatprep.subr.bf16.mxu0 0
    %402 = vmatpush1.bf16.msra.mxu0 %v344
    %403 = vmatprep.subr.bf16.mxu0 0
    %404 = vmatpush1.bf16.msra.mxu0 %v345
    %405 = vmatprep.subr.bf16.mxu0 0
    %406 = vmatpush1.bf16.msra.mxu0 %v346
    %407 = vmatprep.subr.bf16.mxu0 0
    %408 = vmatpush1.bf16.msra.mxu0 %v347
    %409 = vmatprep.subr.bf16.mxu0 0
    %410 = vmatpush1.bf16.msra.mxu0 %v348
    %411 = vmatprep.subr.bf16.mxu0 0
    %412 = vmatpush1.bf16.msra.mxu0 %v349
    %413 = vmatprep.subr.bf16.mxu0 0
    %414 = vmatpush1.bf16.msra.mxu0 %v350
    %415 = vmatprep.mubr.bf16.mxu0 %v218
    %416 = vmatmul.mubr.bf16.gmra.mrb[0].mxu0 %v198
    %v417 = vpop.f32.mrb[0].mxu0
    %v418 = vadd.f32 %v237, %v417
    %v419 = vpop.f32.mrb[0].mxu0
    %v420 = vpop.f32.mrb[0].mxu0
    %v421 = vadd.f32 %v237, %v420
    %v422 = vpop.f32.mrb[0].mxu0
    %423 = vmatprep.mubr.bf16.mxu0 %v230
    %424 = vmatmul.mubr.bf16.gmra.mrb[0].mxu0 %v201
    %v425 = vpop.f32.mrb[0].mxu0
    %v426 = vadd.f32 %v237, %v425
    %v427 = vpop.f32.mrb[0].mxu0
    %v428 = vpop.f32.mrb[0].mxu0
    %v429 = vadd.f32 %v237, %v428
    %v430 = vpop.f32.mrb[0].mxu0
    %431 = vdwg.mxu0
    %432 = vmatprep.subr.bf16.mxu0 0
    %433 = vmatpush1.bf16.msra.mxu0 %v351
    %434 = vmatprep.subr.bf16.mxu0 0
    %435 = vmatpush1.bf16.msra.mxu0 %v352
    %436 = vmatprep.subr.bf16.mxu0 0
    %437 = vmatpush1.bf16.msra.mxu0 %v353
    %438 = vmatprep.subr.bf16.mxu0 0
    %439 = vmatpush1.bf16.msra.mxu0 %v354
    %440 = vmatprep.subr.bf16.mxu0 0
    %441 = vmatpush1.bf16.msra.mxu0 %v355
    %442 = vmatprep.subr.bf16.mxu0 0
    %443 = vmatpush1.bf16.msra.mxu0 %v356
    %444 = vmatprep.subr.bf16.mxu0 0
    %445 = vmatpush1.bf16.msra.mxu0 %v357
    %446 = vmatprep.subr.bf16.mxu0 0
    %447 = vmatpush1.bf16.msra.mxu0 %v358
    %448 = vmatprep.subr.bf16.mxu0 0
    %449 = vmatpush1.bf16.msra.mxu0 0
    %450 = vmatprep.subr.bf16.mxu0 0
    %451 = vmatpush1.bf16.msra.mxu0 0
    %452 = vmatprep.subr.bf16.mxu0 0
    %453 = vmatpush1.bf16.msra.mxu0 0
    %454 = vmatprep.subr.bf16.mxu0 0
    %455 = vmatpush1.bf16.msra.mxu0 0
    %456 = vmatprep.subr.bf16.mxu0 0
    %457 = vmatpush1.bf16.msra.mxu0 0
    %458 = vmatprep.subr.bf16.mxu0 0
    %459 = vmatpush1.bf16.msra.mxu0 0
    %460 = vmatprep.subr.bf16.mxu0 0
    %461 = vmatpush1.bf16.msra.mxu0 0
    %462 = vmatprep.subr.bf16.mxu0 0
    %463 = vmatpush1.bf16.msra.mxu0 0
    %464 = vmatprep.mubr.bf16.mxu0 0
    %465 = vmatmul.mubr.bf16.gmra.mrb[0].mxu0 %v183
    %v466 = vpop.f32.mrb[0].mxu0
    %v467 = vadd.f32 %v418, %v466
    %v468 = vpop.f32.mrb[0].mxu0
    %v469 = vpop.f32.mrb[0].mxu0
    %v470 = vadd.f32 %v421, %v469
    %v471 = vpop.f32.mrb[0].mxu0
    %472 = vmatprep.mubr.bf16.mxu0 0
    %473 = vmatmul.mubr.bf16.gmra.mrb[0].mxu0 %v184
    %v474 = vpop.f32.mrb[0].mxu0
    %v475 = vadd.f32 %v426, %v474
    %v476 = vpop.f32.mrb[0].mxu0
    %v477 = vpop.f32.mrb[0].mxu0
    %v478 = vadd.f32 %v429, %v477
    %v479 = vpop.f32.mrb[0].mxu0
    %480 = vdwg.mxu0
    %v481 = vmax.f32 %v467, 0.0
    %v482 = vmax.f32 %v470, 0.0
    %v483 = vmax.f32 %v475, 0.0
    %v484 = vmax.f32 %v478, 0.0
    %v485 = vld [vmem:[#allocation5] sm:$0xf]
    %v486 = vld [vmem:[#allocation5 + $0x4] sm:$0xf]
    %v487 = vld [vmem:[#allocation5 + $0x8] sm:$0xf]
    %v488 = vld [vmem:[#allocation5 + $0xc] sm:$0xf]
    %v489 = vld [vmem:[#allocation5 + $0x10] sm:$0xf]
    %v490 = vld [vmem:[#allocation5 + $0x14] sm:$0xf]
    %v491 = vld [vmem:[#allocation5 + $0x18] sm:$0xf]
    %v492 = vld [vmem:[#allocation5 + $0x1c] sm:$0xf]
    %v493 = vld [vmem:[#allocation5 + $0x20] sm:$0xf]
    %v494 = vld [vmem:[#allocation5 + $0x24] sm:$0xf]
    %v495 = vld [vmem:[#allocation5 + $0x28] sm:$0xf]
    %v496 = vld [vmem:[#allocation5 + $0x2c] sm:$0xf]
    %v497 = vld [vmem:[#allocation5 + $0x30] sm:$0xf]
    %v498 = vld [vmem:[#allocation5 + $0x34] sm:$0xf]
    %v499 = vld [vmem:[#allocation5 + $0x38] sm:$0xf]
    %v500 = vld [vmem:[#allocation5 + $0x3c] sm:$0xf]
    %v501 = vld [vmem:[#allocation5 + $0x40] sm:$0xf]
    %v502 = vld [vmem:[#allocation5 + $0x44] sm:$0xf]
    %v503 = vld [vmem:[#allocation5 + $0x48] sm:$0xf]
    %v504 = vld [vmem:[#allocation5 + $0x4c] sm:$0xf]
    %v505 = vld [vmem:[#allocation5 + $0x50] sm:$0xf]
    %v506 = vld [vmem:[#allocation5 + $0x54] sm:$0xf]
    %v507 = vld [vmem:[#allocation5 + $0x58] sm:$0xf]
    %v508 = vld [vmem:[#allocation5 + $0x5c] sm:$0xf]
    %v509 = vld [vmem:[#allocation5 + $0x60] sm:$0xf]
    %v510 = vld [vmem:[#allocation5 + $0x64] sm:$0xf]
    %v511 = vld [vmem:[#allocation5 + $0x68] sm:$0xf]
    %v512 = vld [vmem:[#allocation5 + $0x6c] sm:$0xf]
    %v513 = vld [vmem:[#allocation5 + $0x70] sm:$0xf]
    %v514 = vld [vmem:[#allocation5 + $0x74] sm:$0xf]
    %v515 = vld [vmem:[#allocation5 + $0x78] sm:$0xf]
    %v516 = vld [vmem:[#allocation5 + $0x7c] sm:$0xf]
    %v517 = vld [vmem:[#allocation5 + $0x80] sm:$0xf]
    %v518 = vld [vmem:[#allocation5 + $0x84] sm:$0xf]
    %v519 = vld [vmem:[#allocation5 + $0x88] sm:$0xf]
    %v520 = vld [vmem:[#allocation5 + $0x8c] sm:$0xf]
    %v521 = vld [vmem:[#allocation5 + $0x90] sm:$0xf]
    %v522 = vld [vmem:[#allocation5 + $0x94] sm:$0xf]
    %v523 = vld [vmem:[#allocation5 + $0x98] sm:$0xf]
    %v524 = vld [vmem:[#allocation5 + $0x9c] sm:$0xf]
    %v525 = vld [vmem:[#allocation5 + $0xa0] sm:$0xf]
    %v526 = vld [vmem:[#allocation5 + $0xa4] sm:$0xf]
    %v527 = vld [vmem:[#allocation5 + $0xa8] sm:$0xf]
    %v528 = vld [vmem:[#allocation5 + $0xac] sm:$0xf]
    %v529 = vld [vmem:[#allocation5 + $0xb0] sm:$0xf]
    %v530 = vld [vmem:[#allocation5 + $0xb4] sm:$0xf]
    %v531 = vld [vmem:[#allocation5 + $0xb8] sm:$0xf]
    %v532 = vld [vmem:[#allocation5 + $0xbc] sm:$0xf]
    %v533 = vld [vmem:[%s4] sm:$0x1]
    %v534 = vpack.c.bf16 %v482, %v481
    %v535 = vpack.c.bf16 %v484, %v483
    %536 = vst [vmem:[#allocation2 + $0x8] sm:$0xff] %v534
    %537 = vst [vmem:[#allocation2 + $0x18] sm:$0xff] %v535
    %v538 = vld [vmem:[#allocation2] sm:$0x80]
    %v539 = vld [vmem:[#allocation2 + $0x8] sm:$0x7f]
    %v540 = vld [vmem:[#allocation2 + $0x10] sm:$0x80]
    %v541 = vld [vmem:[#allocation2 + $0x18] sm:$0x7f]
    %v546 = vrot.slane %v538, 7
    %v547 = vrot.slane %v539, 7
    %v548 = vsel %vm195, %v546, %v547
    %v549 = vrot.slane %v540, 7
    %v550 = vrot.slane %v541, 7
    %v551 = vsel %vm195, %v549, %v550
    %v554 = vld [vmem:[#allocation2 + $0x8] sm:$0xff]
    %v555 = vld [vmem:[#allocation2 + $0x18] sm:$0xff]
    %v557 = vshrl.u32 %v538, 16
    %v559 = vrot.slane %v557, 7
    %v561 = vshrl.u32 %v554, 16
    %v563 = vrot.slane %v561, 7
    %v564 = vshll.u32 %v554, 16
    %v566 = vor.u32 %v563, %v564
    %v567 = vsel %vm206, %v559, %v566
    %v569 = vshrl.u32 %v540, 16
    %v571 = vrot.slane %v569, 7
    %v573 = vshrl.u32 %v555, 16
    %v575 = vrot.slane %v573, 7
    %v576 = vshll.u32 %v555, 16
    %v578 = vor.u32 %v575, %v576
    %v579 = vsel %vm206, %v571, %v578
    %v583 = vlaneseq
    %v584 = vshrl.u32 %v583, 7
    %v585 = vsub.s32 0, %v584
    %v586 = vrot.slane %v533, %v585
    %v636 = vunpack.c.l.b16 %v485
    %v637 = vunpack.c.l.b16 %v486
    %v638 = vunpack.c.l.b16 %v487
    %v639 = vunpack.c.l.b16 %v488
    %v640 = vunpack.c.l.b16 %v489
    %v641 = vunpack.c.l.b16 %v490
    %v642 = vunpack.c.l.b16 %v491
    %v643 = vunpack.c.l.b16 %v492
    %v644 = vunpack.c.l.b16 %v493
    %v645 = vunpack.c.l.b16 %v494
    %v646 = vunpack.c.l.b16 %v495
    %v647 = vunpack.c.l.b16 %v496
    %v648 = vunpack.c.l.b16 %v497
    %v649 = vunpack.c.l.b16 %v498
    %v650 = vunpack.c.l.b16 %v499
    %v651 = vunpack.c.l.b16 %v500
    %v652 = vunpack.c.l.b16 %v501
    %v653 = vunpack.c.l.b16 %v502
    %v654 = vunpack.c.l.b16 %v503
    %v655 = vunpack.c.l.b16 %v504
    %v656 = vunpack.c.l.b16 %v505
    %v657 = vunpack.c.l.b16 %v506
    %v658 = vunpack.c.l.b16 %v507
    %v659 = vunpack.c.l.b16 %v508
    %v660 = vunpack.c.l.b16 %v509
    %v661 = vunpack.c.l.b16 %v510
    %v662 = vunpack.c.l.b16 %v511
    %v663 = vunpack.c.l.b16 %v512
    %v664 = vunpack.c.l.b16 %v513
    %v665 = vunpack.c.l.b16 %v514
    %v666 = vunpack.c.l.b16 %v515
    %v667 = vunpack.c.l.b16 %v516
    %v668 = vunpack.c.l.b16 %v517
    %v669 = vunpack.c.l.b16 %v518
    %v670 = vunpack.c.l.b16 %v519
    %v671 = vunpack.c.l.b16 %v520
    %v672 = vunpack.c.l.b16 %v521
    %v673 = vunpack.c.l.b16 %v522
    %v674 = vunpack.c.l.b16 %v523
    %v675 = vunpack.c.l.b16 %v524
    %v676 = vunpack.c.l.b16 %v525
    %v677 = vunpack.c.l.b16 %v526
    %v678 = vunpack.c.l.b16 %v527
    %v679 = vunpack.c.l.b16 %v528
    %v680 = vunpack.c.l.b16 %v529
    %v681 = vunpack.c.l.b16 %v530
    %v682 = vunpack.c.l.b16 %v531
    %v683 = vunpack.c.l.b16 %v532
    %v684 = vpack.c.b16 %v637, %v636
    %v685 = vpack.c.b16 %v639, %v638
    %v686 = vpack.c.b16 %v641, %v640
    %v687 = vpack.c.b16 %v643, %v642
    %v688 = vpack.c.b16 %v645, %v644
    %v689 = vpack.c.b16 %v647, %v646
    %v690 = vpack.c.b16 %v649, %v648
    %v691 = vpack.c.b16 %v651, %v650
    %v692 = vpack.c.b16 %v653, %v652
    %v693 = vpack.c.b16 %v655, %v654
    %v694 = vpack.c.b16 %v657, %v656
    %v695 = vpack.c.b16 %v659, %v658
    %v696 = vpack.c.b16 %v661, %v660
    %v697 = vpack.c.b16 %v663, %v662
    %v698 = vpack.c.b16 %v665, %v664
    %v699 = vpack.c.b16 %v667, %v666
    %v700 = vpack.c.b16 %v669, %v668
    %v701 = vpack.c.b16 %v671, %v670
    %v702 = vpack.c.b16 %v673, %v672
    %v703 = vpack.c.b16 %v675, %v674
    %v704 = vpack.c.b16 %v677, %v676
    %v705 = vpack.c.b16 %v679, %v678
    %v706 = vpack.c.b16 %v681, %v680
    %v707 = vpack.c.b16 %v683, %v682
    %732 = vmatprep.subr.bf16.mxu0 0
    %733 = vmatpush1.bf16.msra.mxu0 %v684
    %734 = vmatprep.subr.bf16.mxu0 0
    %735 = vmatpush1.bf16.msra.mxu0 %v685
    %736 = vmatprep.subr.bf16.mxu0 0
    %737 = vmatpush1.bf16.msra.mxu0 %v686
    %738 = vmatprep.subr.bf16.mxu0 0
    %739 = vmatpush1.bf16.msra.mxu0 %v687
    %740 = vmatprep.subr.bf16.mxu0 0
    %741 = vmatpush1.bf16.msra.mxu0 %v688
    %742 = vmatprep.subr.bf16.mxu0 0
    %743 = vmatpush1.bf16.msra.mxu0 %v689
    %744 = vmatprep.subr.bf16.mxu0 0
    %745 = vmatpush1.bf16.msra.mxu0 %v690
    %746 = vmatprep.subr.bf16.mxu0 0
    %747 = vmatpush1.bf16.msra.mxu0 %v691
    %748 = vmatprep.subr.bf16.mxu0 0
    %749 = vmatpush1.bf16.msra.mxu0 %v692
    %750 = vmatprep.subr.bf16.mxu0 0
    %751 = vmatpush1.bf16.msra.mxu0 %v693
    %752 = vmatprep.subr.bf16.mxu0 0
    %753 = vmatpush1.bf16.msra.mxu0 %v694
    %754 = vmatprep.subr.bf16.mxu0 0
    %755 = vmatpush1.bf16.msra.mxu0 %v695
    %756 = vmatprep.subr.bf16.mxu0 0
    %757 = vmatpush1.bf16.msra.mxu0 %v696
    %758 = vmatprep.subr.bf16.mxu0 0
    %759 = vmatpush1.bf16.msra.mxu0 %v697
    %760 = vmatprep.subr.bf16.mxu0 0
    %761 = vmatpush1.bf16.msra.mxu0 %v698
    %762 = vmatprep.subr.bf16.mxu0 0
    %763 = vmatpush1.bf16.msra.mxu0 %v699
    %764 = vmatprep.mubr.bf16.mxu0 %v567
    %765 = vmatmul.mubr.bf16.gmra.mrb[0].mxu0 %v548
    %v766 = vpop.f32.mrb[0].mxu0
    %v767 = vadd.f32 %v586, %v766
    %v768 = vpop.f32.mrb[0].mxu0
    %v769 = vpop.f32.mrb[0].mxu0
    %v770 = vadd.f32 %v586, %v769
    %v771 = vpop.f32.mrb[0].mxu0
    %772 = vmatprep.mubr.bf16.mxu0 %v579
    %773 = vmatmul.mubr.bf16.gmra.mrb[0].mxu0 %v551
    %v774 = vpop.f32.mrb[0].mxu0
    %v775 = vadd.f32 %v586, %v774
    %v776 = vpop.f32.mrb[0].mxu0
    %v777 = vpop.f32.mrb[0].mxu0
    %v778 = vadd.f32 %v586, %v777
    %v779 = vpop.f32.mrb[0].mxu0
    %780 = vdwg.mxu0
    %781 = vmatprep.subr.bf16.mxu0 0
    %782 = vmatpush1.bf16.msra.mxu0 %v700
    %783 = vmatprep.subr.bf16.mxu0 0
    %784 = vmatpush1.bf16.msra.mxu0 %v701
    %785 = vmatprep.subr.bf16.mxu0 0
    %786 = vmatpush1.bf16.msra.mxu0 %v702
    %787 = vmatprep.subr.bf16.mxu0 0
    %788 = vmatpush1.bf16.msra.mxu0 %v703
    %789 = vmatprep.subr.bf16.mxu0 0
    %790 = vmatpush1.bf16.msra.mxu0 %v704
    %791 = vmatprep.subr.bf16.mxu0 0
    %792 = vmatpush1.bf16.msra.mxu0 %v705
    %793 = vmatprep.subr.bf16.mxu0 0
    %794 = vmatpush1.bf16.msra.mxu0 %v706
    %795 = vmatprep.subr.bf16.mxu0 0
    %796 = vmatpush1.bf16.msra.mxu0 %v707
    %797 = vmatprep.subr.bf16.mxu0 0
    %798 = vmatpush1.bf16.msra.mxu0 0
    %799 = vmatprep.subr.bf16.mxu0 0
    %800 = vmatpush1.bf16.msra.mxu0 0
    %801 = vmatprep.subr.bf16.mxu0 0
    %802 = vmatpush1.bf16.msra.mxu0 0
    %803 = vmatprep.subr.bf16.mxu0 0
    %804 = vmatpush1.bf16.msra.mxu0 0
    %805 = vmatprep.subr.bf16.mxu0 0
    %806 = vmatpush1.bf16.msra.mxu0 0
    %807 = vmatprep.subr.bf16.mxu0 0
    %808 = vmatpush1.bf16.msra.mxu0 0
    %809 = vmatprep.subr.bf16.mxu0 0
    %810 = vmatpush1.bf16.msra.mxu0 0
    %811 = vmatprep.subr.bf16.mxu0 0
    %812 = vmatpush1.bf16.msra.mxu0 0
    %813 = vmatprep.mubr.bf16.mxu0 0
    %814 = vmatmul.mubr.bf16.gmra.mrb[0].mxu0 %v534
    %v815 = vpop.f32.mrb[0].mxu0
    %v816 = vadd.f32 %v767, %v815
    %v817 = vpop.f32.mrb[0].mxu0
    %v818 = vpop.f32.mrb[0].mxu0
    %v819 = vadd.f32 %v770, %v818
    %v820 = vpop.f32.mrb[0].mxu0
    %821 = vmatprep.mubr.bf16.mxu0 0
    %822 = vmatmul.mubr.bf16.gmra.mrb[0].mxu0 %v535
    %v823 = vpop.f32.mrb[0].mxu0
    %v824 = vadd.f32 %v775, %v823
    %v825 = vpop.f32.mrb[0].mxu0
    %v826 = vpop.f32.mrb[0].mxu0
    %v827 = vadd.f32 %v778, %v826
    %v828 = vpop.f32.mrb[0].mxu0
    %829 = vdwg.mxu0
    %v830 = vmax.f32 %v816, 0.0
    %v831 = vmax.f32 %v819, 0.0
    %v832 = vmax.f32 %v824, 0.0
    %v833 = vmax.f32 %v827, 0.0
    %v834 = vadd.f32 %v830, %v76
    %v835 = vadd.f32 %v831, %v77
    %v836 = vadd.f32 %v832, %v118
    %v837 = vadd.f32 %v833, %v119
    %v838 = vmax.f32 %v834, 0.0
    %v839 = vmax.f32 %v835, 0.0
    %v840 = vmax.f32 %v836, 0.0
    %v841 = vmax.f32 %v837, 0.0
    %s842 = scalar_lea.vmem [#allocation3], 192
    %v843 = vld [vmem:[%s842] sm:$0xf]
    %v844 = vld [vmem:[%s842 + $0x4] sm:$0xf]
    %v845 = vld [vmem:[%s842 + $0x8] sm:$0xf]
    %v846 = vld [vmem:[%s842 + $0xc] sm:$0xf]
    %v847 = vld [vmem:[%s842 + $0x10] sm:$0xf]
    %v848 = vld [vmem:[%s842 + $0x14] sm:$0xf]
    %v849 = vld [vmem:[%s842 + $0x18] sm:$0xf]
    %v850 = vld [vmem:[%s842 + $0x1c] sm:$0xf]
    %v851 = vld [vmem:[%s842 + $0x20] sm:$0xf]
    %v852 = vld [vmem:[%s842 + $0x24] sm:$0xf]
    %v853 = vld [vmem:[%s842 + $0x28] sm:$0xf]
    %v854 = vld [vmem:[%s842 + $0x2c] sm:$0xf]
    %v855 = vld [vmem:[%s842 + $0x30] sm:$0xf]
    %v856 = vld [vmem:[%s842 + $0x34] sm:$0xf]
    %v857 = vld [vmem:[%s842 + $0x38] sm:$0xf]
    %v858 = vld [vmem:[%s842 + $0x3c] sm:$0xf]
    %v859 = vld [vmem:[%s842 + $0x40] sm:$0xf]
    %v860 = vld [vmem:[%s842 + $0x44] sm:$0xf]
    %v861 = vld [vmem:[%s842 + $0x48] sm:$0xf]
    %v862 = vld [vmem:[%s842 + $0x4c] sm:$0xf]
    %v863 = vld [vmem:[%s842 + $0x50] sm:$0xf]
    %v864 = vld [vmem:[%s842 + $0x54] sm:$0xf]
    %v865 = vld [vmem:[%s842 + $0x58] sm:$0xf]
    %v866 = vld [vmem:[%s842 + $0x5c] sm:$0xf]
    %v867 = vld [vmem:[%s842 + $0x60] sm:$0xf]
    %v868 = vld [vmem:[%s842 + $0x64] sm:$0xf]
    %v869 = vld [vmem:[%s842 + $0x68] sm:$0xf]
    %v870 = vld [vmem:[%s842 + $0x6c] sm:$0xf]
    %v871 = vld [vmem:[%s842 + $0x70] sm:$0xf]
    %v872 = vld [vmem:[%s842 + $0x74] sm:$0xf]
    %v873 = vld [vmem:[%s842 + $0x78] sm:$0xf]
    %v874 = vld [vmem:[%s842 + $0x7c] sm:$0xf]
    %v875 = vld [vmem:[%s842 + $0x80] sm:$0xf]
    %v876 = vld [vmem:[%s842 + $0x84] sm:$0xf]
    %v877 = vld [vmem:[%s842 + $0x88] sm:$0xf]
    %v878 = vld [vmem:[%s842 + $0x8c] sm:$0xf]
    %v879 = vld [vmem:[%s842 + $0x90] sm:$0xf]
    %v880 = vld [vmem:[%s842 + $0x94] sm:$0xf]
    %v881 = vld [vmem:[%s842 + $0x98] sm:$0xf]
    %v882 = vld [vmem:[%s842 + $0x9c] sm:$0xf]
    %v883 = vld [vmem:[%s842 + $0xa0] sm:$0xf]
    %v884 = vld [vmem:[%s842 + $0xa4] sm:$0xf]
    %v885 = vld [vmem:[%s842 + $0xa8] sm:$0xf]
    %v886 = vld [vmem:[%s842 + $0xac] sm:$0xf]
    %v887 = vld [vmem:[%s842 + $0xb0] sm:$0xf]
    %v888 = vld [vmem:[%s842 + $0xb4] sm:$0xf]
    %v889 = vld [vmem:[%s842 + $0xb8] sm:$0xf]
    %v890 = vld [vmem:[%s842 + $0xbc] sm:$0xf]
    %s891 = scalar_lea.vmem %s2, 1
    %v892 = vld [vmem:[%s891] sm:$0x1]
    %v893 = vpack.c.bf16 %v839, %v838
    %v894 = vpack.c.bf16 %v841, %v840
    %895 = vst [vmem:[#allocation2 + $0x8] sm:$0xff] %v893
    %896 = vst [vmem:[#allocation2 + $0x18] sm:$0xff] %v894
    %v897 = vld [vmem:[#allocation2] sm:$0xc0]
    %v898 = vld [vmem:[#allocation2 + $0x8] sm:$0x3f]
    %v899 = vld [vmem:[#allocation2 + $0x10] sm:$0xc0]
    %v900 = vld [vmem:[#allocation2 + $0x18] sm:$0x3f]
    %vm905 = vcmask 1041408
    %v906 = vrot.slane %v897, 6
    %v907 = vrot.slane %v898, 6
    %v908 = vsel %vm905, %v906, %v907
    %v909 = vrot.slane %v899, 6
    %v910 = vrot.slane %v900, 6
    %v911 = vsel %vm905, %v909, %v910
    %v914 = vld [vmem:[#allocation2] sm:$0x80]
    %v915 = vld [vmem:[#allocation2 + $0x8] sm:$0x7f]
    %v916 = vld [vmem:[#allocation2 + $0x10] sm:$0x80]
    %v917 = vld [vmem:[#allocation2 + $0x18] sm:$0x7f]
    %v922 = vrot.slane %v914, 7
    %v923 = vrot.slane %v915, 7
    %v924 = vsel %vm195, %v922, %v923
    %v925 = vrot.slane %v916, 7
    %v926 = vrot.slane %v917, 7
    %v927 = vsel %vm195, %v925, %v926
    %v931 = vlaneseq
    %v932 = vshrl.u32 %v931, 7
    %v933 = vsub.s32 0, %v932
    %v934 = vrot.slane %v892, %v933
    %v984 = vunpack.c.l.b16 %v843
    %v985 = vunpack.c.l.b16 %v844
    %v986 = vunpack.c.l.b16 %v845
    %v987 = vunpack.c.l.b16 %v846
    %v988 = vunpack.c.l.b16 %v847
    %v989 = vunpack.c.l.b16 %v848
    %v990 = vunpack.c.l.b16 %v849
    %v991 = vunpack.c.l.b16 %v850
    %v992 = vunpack.c.l.b16 %v851
    %v993 = vunpack.c.l.b16 %v852
    %v994 = vunpack.c.l.b16 %v853
    %v995 = vunpack.c.l.b16 %v854
    %v996 = vunpack.c.l.b16 %v855
    %v997 = vunpack.c.l.b16 %v856
    %v998 = vunpack.c.l.b16 %v857
    %v999 = vunpack.c.l.b16 %v858
    %v1000 = vunpack.c.l.b16 %v859
    %v1001 = vunpack.c.l.b16 %v860
    %v1002 = vunpack.c.l.b16 %v861
    %v1003 = vunpack.c.l.b16 %v862
    %v1004 = vunpack.c.l.b16 %v863
    %v1005 = vunpack.c.l.b16 %v864
    %v1006 = vunpack.c.l.b16 %v865
    %v1007 = vunpack.c.l.b16 %v866
    %v1008 = vunpack.c.l.b16 %v867
    %v1009 = vunpack.c.l.b16 %v868
    %v1010 = vunpack.c.l.b16 %v869
    %v1011 = vunpack.c.l.b16 %v870
    %v1012 = vunpack.c.l.b16 %v871
    %v1013 = vunpack.c.l.b16 %v872
    %v1014 = vunpack.c.l.b16 %v873
    %v1015 = vunpack.c.l.b16 %v874
    %v1016 = vunpack.c.l.b16 %v875
    %v1017 = vunpack.c.l.b16 %v876
    %v1018 = vunpack.c.l.b16 %v877
    %v1019 = vunpack.c.l.b16 %v878
    %v1020 = vunpack.c.l.b16 %v879
    %v1021 = vunpack.c.l.b16 %v880
    %v1022 = vunpack.c.l.b16 %v881
    %v1023 = vunpack.c.l.b16 %v882
    %v1024 = vunpack.c.l.b16 %v883
    %v1025 = vunpack.c.l.b16 %v884
    %v1026 = vunpack.c.l.b16 %v885
    %v1027 = vunpack.c.l.b16 %v886
    %v1028 = vunpack.c.l.b16 %v887
    %v1029 = vunpack.c.l.b16 %v888
    %v1030 = vunpack.c.l.b16 %v889
    %v1031 = vunpack.c.l.b16 %v890
    %v1032 = vpack.c.b16 %v985, %v984
    %v1033 = vpack.c.b16 %v987, %v986
    %v1034 = vpack.c.b16 %v989, %v988
    %v1035 = vpack.c.b16 %v991, %v990
    %v1036 = vpack.c.b16 %v993, %v992
    %v1037 = vpack.c.b16 %v995, %v994
    %v1038 = vpack.c.b16 %v997, %v996
    %v1039 = vpack.c.b16 %v999, %v998
    %v1040 = vpack.c.b16 %v1001, %v1000
    %v1041 = vpack.c.b16 %v1003, %v1002
    %v1042 = vpack.c.b16 %v1005, %v1004
    %v1043 = vpack.c.b16 %v1007, %v1006
    %v1044 = vpack.c.b16 %v1009, %v1008
    %v1045 = vpack.c.b16 %v1011, %v1010
    %v1046 = vpack.c.b16 %v1013, %v1012
    %v1047 = vpack.c.b16 %v1015, %v1014
    %v1048 = vpack.c.b16 %v1017, %v1016
    %v1049 = vpack.c.b16 %v1019, %v1018
    %v1050 = vpack.c.b16 %v1021, %v1020
    %v1051 = vpack.c.b16 %v1023, %v1022
    %v1052 = vpack.c.b16 %v1025, %v1024
    %v1053 = vpack.c.b16 %v1027, %v1026
    %v1054 = vpack.c.b16 %v1029, %v1028
    %v1055 = vpack.c.b16 %v1031, %v1030
    %1080 = vmatprep.subr.bf16.mxu0 0
    %1081 = vmatpush1.bf16.msra.mxu0 %v1032
    %1082 = vmatprep.subr.bf16.mxu0 0
    %1083 = vmatpush1.bf16.msra.mxu0 %v1033
    %1084 = vmatprep.subr.bf16.mxu0 0
    %1085 = vmatpush1.bf16.msra.mxu0 %v1034
    %1086 = vmatprep.subr.bf16.mxu0 0
    %1087 = vmatpush1.bf16.msra.mxu0 %v1035
    %1088 = vmatprep.subr.bf16.mxu0 0
    %1089 = vmatpush1.bf16.msra.mxu0 %v1036
    %1090 = vmatprep.subr.bf16.mxu0 0
    %1091 = vmatpush1.bf16.msra.mxu0 %v1037
    %1092 = vmatprep.subr.bf16.mxu0 0
    %1093 = vmatpush1.bf16.msra.mxu0 %v1038
    %1094 = vmatprep.subr.bf16.mxu0 0
    %1095 = vmatpush1.bf16.msra.mxu0 %v1039
    %1096 = vmatprep.subr.bf16.mxu0 0
    %1097 = vmatpush1.bf16.msra.mxu0 %v1040
    %1098 = vmatprep.subr.bf16.mxu0 0
    %1099 = vmatpush1.bf16.msra.mxu0 %v1041
    %1100 = vmatprep.subr.bf16.mxu0 0
    %1101 = vmatpush1.bf16.msra.mxu0 %v1042
    %1102 = vmatprep.subr.bf16.mxu0 0
    %1103 = vmatpush1.bf16.msra.mxu0 %v1043
    %1104 = vmatprep.subr.bf16.mxu0 0
    %1105 = vmatpush1.bf16.msra.mxu0 %v1044
    %1106 = vmatprep.subr.bf16.mxu0 0
    %1107 = vmatpush1.bf16.msra.mxu0 %v1045
    %1108 = vmatprep.subr.bf16.mxu0 0
    %1109 = vmatpush1.bf16.msra.mxu0 %v1046
    %1110 = vmatprep.subr.bf16.mxu0 0
    %1111 = vmatpush1.bf16.msra.mxu0 %v1047
    %1112 = vmatprep.mubr.bf16.mxu0 %v924
    %1113 = vmatmul.mubr.bf16.gmra.mrb[0].mxu0 %v908
    %v1114 = vpop.f32.mrb[0].mxu0
    %v1115 = vadd.f32 %v934, %v1114
    %v1116 = vpop.f32.mrb[0].mxu0
    %v1117 = vpop.f32.mrb[0].mxu0
    %v1118 = vadd.f32 %v934, %v1117
    %v1119 = vpop.f32.mrb[0].mxu0
    %1120 = vmatprep.mubr.bf16.mxu0 %v927
    %1121 = vmatmul.mubr.bf16.gmra.mrb[0].mxu0 %v911
    %v1122 = vpop.f32.mrb[0].mxu0
    %v1123 = vadd.f32 %v934, %v1122
    %v1124 = vpop.f32.mrb[0].mxu0
    %v1125 = vpop.f32.mrb[0].mxu0
    %v1126 = vadd.f32 %v934, %v1125
    %v1127 = vpop.f32.mrb[0].mxu0
    %1128 = vdwg.mxu0
    %1129 = vmatprep.subr.bf16.mxu0 0
    %1130 = vmatpush1.bf16.msra.mxu0 %v1048
    %1131 = vmatprep.subr.bf16.mxu0 0
    %1132 = vmatpush1.bf16.msra.mxu0 %v1049
    %1133 = vmatprep.subr.bf16.mxu0 0
    %1134 = vmatpush1.bf16.msra.mxu0 %v1050
    %1135 = vmatprep.subr.bf16.mxu0 0
    %1136 = vmatpush1.bf16.msra.mxu0 %v1051
    %1137 = vmatprep.subr.bf16.mxu0 0
    %1138 = vmatpush1.bf16.msra.mxu0 %v1052
    %1139 = vmatprep.subr.bf16.mxu0 0
    %1140 = vmatpush1.bf16.msra.mxu0 %v1053
    %1141 = vmatprep.subr.bf16.mxu0 0
    %1142 = vmatpush1.bf16.msra.mxu0 %v1054
    %1143 = vmatprep.subr.bf16.mxu0 0
    %1144 = vmatpush1.bf16.msra.mxu0 %v1055
    %1145 = vmatprep.subr.bf16.mxu0 0
    %1146 = vmatpush1.bf16.msra.mxu0 0
    %1147 = vmatprep.subr.bf16.mxu0 0
    %1148 = vmatpush1.bf16.msra.mxu0 0
    %1149 = vmatprep.subr.bf16.mxu0 0
    %1150 = vmatpush1.bf16.msra.mxu0 0
    %1151 = vmatprep.subr.bf16.mxu0 0
    %1152 = vmatpush1.bf16.msra.mxu0 0
    %1153 = vmatprep.subr.bf16.mxu0 0
    %1154 = vmatpush1.bf16.msra.mxu0 0
    %1155 = vmatprep.subr.bf16.mxu0 0
    %1156 = vmatpush1.bf16.msra.mxu0 0
    %1157 = vmatprep.subr.bf16.mxu0 0
    %1158 = vmatpush1.bf16.msra.mxu0 0
    %1159 = vmatprep.subr.bf16.mxu0 0
    %1160 = vmatpush1.bf16.msra.mxu0 0
    %1161 = vmatprep.mubr.bf16.mxu0 0
    %1162 = vmatmul.mubr.bf16.gmra.mrb[0].mxu0 %v893
    %v1163 = vpop.f32.mrb[0].mxu0
    %v1164 = vadd.f32 %v1115, %v1163
    %v1165 = vpop.f32.mrb[0].mxu0
    %v1166 = vpop.f32.mrb[0].mxu0
    %v1167 = vadd.f32 %v1118, %v1166
    %v1168 = vpop.f32.mrb[0].mxu0
    %1169 = vmatprep.mubr.bf16.mxu0 0
    %1170 = vmatmul.mubr.bf16.gmra.mrb[0].mxu0 %v894
    %v1171 = vpop.f32.mrb[0].mxu0
    %v1172 = vadd.f32 %v1123, %v1171
    %v1173 = vpop.f32.mrb[0].mxu0
    %v1174 = vpop.f32.mrb[0].mxu0
    %v1175 = vadd.f32 %v1126, %v1174
    %v1176 = vpop.f32.mrb[0].mxu0
    %1177 = vdwg.mxu0
    %v1178 = vmax.f32 %v1164, 0.0
    %v1179 = vmax.f32 %v1167, 0.0
    %v1180 = vmax.f32 %v1172, 0.0
    %v1181 = vmax.f32 %v1175, 0.0
    %s1182 = scalar_lea.vmem [#allocation5], 192
    %v1183 = vld [vmem:[%s1182] sm:$0xf]
    %v1184 = vld [vmem:[%s1182 + $0x4] sm:$0xf]
    %v1185 = vld [vmem:[%s1182 + $0x8] sm:$0xf]
    %v1186 = vld [vmem:[%s1182 + $0xc] sm:$0xf]
    %v1187 = vld [vmem:[%s1182 + $0x10] sm:$0xf]
    %v1188 = vld [vmem:[%s1182 + $0x14] sm:$0xf]
    %v1189 = vld [vmem:[%s1182 + $0x18] sm:$0xf]
    %v1190 = vld [vmem:[%s1182 + $0x1c] sm:$0xf]
    %v1191 = vld [vmem:[%s1182 + $0x20] sm:$0xf]
    %v1192 = vld [vmem:[%s1182 + $0x24] sm:$0xf]
    %v1193 = vld [vmem:[%s1182 + $0x28] sm:$0xf]
    %v1194 = vld [vmem:[%s1182 + $0x2c] sm:$0xf]
    %v1195 = vld [vmem:[%s1182 + $0x30] sm:$0xf]
    %v1196 = vld [vmem:[%s1182 + $0x34] sm:$0xf]
    %v1197 = vld [vmem:[%s1182 + $0x38] sm:$0xf]
    %v1198 = vld [vmem:[%s1182 + $0x3c] sm:$0xf]
    %v1199 = vld [vmem:[%s1182 + $0x40] sm:$0xf]
    %v1200 = vld [vmem:[%s1182 + $0x44] sm:$0xf]
    %v1201 = vld [vmem:[%s1182 + $0x48] sm:$0xf]
    %v1202 = vld [vmem:[%s1182 + $0x4c] sm:$0xf]
    %v1203 = vld [vmem:[%s1182 + $0x50] sm:$0xf]
    %v1204 = vld [vmem:[%s1182 + $0x54] sm:$0xf]
    %v1205 = vld [vmem:[%s1182 + $0x58] sm:$0xf]
    %v1206 = vld [vmem:[%s1182 + $0x5c] sm:$0xf]
    %v1207 = vld [vmem:[%s1182 + $0x60] sm:$0xf]
    %v1208 = vld [vmem:[%s1182 + $0x64] sm:$0xf]
    %v1209 = vld [vmem:[%s1182 + $0x68] sm:$0xf]
    %v1210 = vld [vmem:[%s1182 + $0x6c] sm:$0xf]
    %v1211 = vld [vmem:[%s1182 + $0x70] sm:$0xf]
    %v1212 = vld [vmem:[%s1182 + $0x74] sm:$0xf]
    %v1213 = vld [vmem:[%s1182 + $0x78] sm:$0xf]
    %v1214 = vld [vmem:[%s1182 + $0x7c] sm:$0xf]
    %v1215 = vld [vmem:[%s1182 + $0x80] sm:$0xf]
    %v1216 = vld [vmem:[%s1182 + $0x84] sm:$0xf]
    %v1217 = vld [vmem:[%s1182 + $0x88] sm:$0xf]
    %v1218 = vld [vmem:[%s1182 + $0x8c] sm:$0xf]
    %v1219 = vld [vmem:[%s1182 + $0x90] sm:$0xf]
    %v1220 = vld [vmem:[%s1182 + $0x94] sm:$0xf]
    %v1221 = vld [vmem:[%s1182 + $0x98] sm:$0xf]
    %v1222 = vld [vmem:[%s1182 + $0x9c] sm:$0xf]
    %v1223 = vld [vmem:[%s1182 + $0xa0] sm:$0xf]
    %v1224 = vld [vmem:[%s1182 + $0xa4] sm:$0xf]
    %v1225 = vld [vmem:[%s1182 + $0xa8] sm:$0xf]
    %v1226 = vld [vmem:[%s1182 + $0xac] sm:$0xf]
    %v1227 = vld [vmem:[%s1182 + $0xb0] sm:$0xf]
    %v1228 = vld [vmem:[%s1182 + $0xb4] sm:$0xf]
    %v1229 = vld [vmem:[%s1182 + $0xb8] sm:$0xf]
    %v1230 = vld [vmem:[%s1182 + $0xbc] sm:$0xf]
    %s1231 = scalar_lea.vmem %s4, 1
    %v1232 = vld [vmem:[%s1231] sm:$0x1]
    %v1233 = vpack.c.bf16 %v1179, %v1178
    %v1234 = vpack.c.bf16 %v1181, %v1180
    %1235 = vst [vmem:[#allocation2 + $0x8] sm:$0xff] %v1233
    %1236 = vst [vmem:[#allocation2 + $0x18] sm:$0xff] %v1234
    %v1237 = vld [vmem:[#allocation2] sm:$0xc0]
    %v1238 = vld [vmem:[#allocation2 + $0x8] sm:$0x3f]
    %v1239 = vld [vmem:[#allocation2 + $0x10] sm:$0xc0]
    %v1240 = vld [vmem:[#allocation2 + $0x18] sm:$0x3f]
    %v1245 = vrot.slane %v1237, 6
    %v1246 = vrot.slane %v1238, 6
    %v1247 = vsel %vm905, %v1245, %v1246
    %v1248 = vrot.slane %v1239, 6
    %v1249 = vrot.slane %v1240, 6
    %v1250 = vsel %vm905, %v1248, %v1249
    %v1253 = vld [vmem:[#allocation2] sm:$0x80]
    %v1254 = vld [vmem:[#allocation2 + $0x8] sm:$0x7f]
    %v1255 = vld [vmem:[#allocation2 + $0x10] sm:$0x80]
    %v1256 = vld [vmem:[#allocation2 + $0x18] sm:$0x7f]
    %v1261 = vrot.slane %v1253, 7
    %v1262 = vrot.slane %v1254, 7
    %v1263 = vsel %vm195, %v1261, %v1262
    %v1264 = vrot.slane %v1255, 7
    %v1265 = vrot.slane %v1256, 7
    %v1266 = vsel %vm195, %v1264, %v1265
    %v1270 = vlaneseq
    %v1271 = vshrl.u32 %v1270, 7
    %v1272 = vsub.s32 0, %v1271
    %v1273 = vrot.slane %v1232, %v1272
    %v1323 = vunpack.c.l.b16 %v1183
    %v1324 = vunpack.c.l.b16 %v1184
    %v1325 = vunpack.c.l.b16 %v1185
    %v1326 = vunpack.c.l.b16 %v1186
    %v1327 = vunpack.c.l.b16 %v1187
    %v1328 = vunpack.c.l.b16 %v1188
    %v1329 = vunpack.c.l.b16 %v1189
    %v1330 = vunpack.c.l.b16 %v1190
    %v1331 = vunpack.c.l.b16 %v1191
    %v1332 = vunpack.c.l.b16 %v1192
    %v1333 = vunpack.c.l.b16 %v1193
    %v1334 = vunpack.c.l.b16 %v1194
    %v1335 = vunpack.c.l.b16 %v1195
    %v1336 = vunpack.c.l.b16 %v1196
    %v1337 = vunpack.c.l.b16 %v1197
    %v1338 = vunpack.c.l.b16 %v1198
    %v1339 = vunpack.c.l.b16 %v1199
    %v1340 = vunpack.c.l.b16 %v1200
    %v1341 = vunpack.c.l.b16 %v1201
    %v1342 = vunpack.c.l.b16 %v1202
    %v1343 = vunpack.c.l.b16 %v1203
    %v1344 = vunpack.c.l.b16 %v1204
    %v1345 = vunpack.c.l.b16 %v1205
    %v1346 = vunpack.c.l.b16 %v1206
    %v1347 = vunpack.c.l.b16 %v1207
    %v1348 = vunpack.c.l.b16 %v1208
    %v1349 = vunpack.c.l.b16 %v1209
    %v1350 = vunpack.c.l.b16 %v1210
    %v1351 = vunpack.c.l.b16 %v1211
    %v1352 = vunpack.c.l.b16 %v1212
    %v1353 = vunpack.c.l.b16 %v1213
    %v1354 = vunpack.c.l.b16 %v1214
    %v1355 = vunpack.c.l.b16 %v1215
    %v1356 = vunpack.c.l.b16 %v1216
    %v1357 = vunpack.c.l.b16 %v1217
    %v1358 = vunpack.c.l.b16 %v1218
    %v1359 = vunpack.c.l.b16 %v1219
    %v1360 = vunpack.c.l.b16 %v1220
    %v1361 = vunpack.c.l.b16 %v1221
    %v1362 = vunpack.c.l.b16 %v1222
    %v1363 = vunpack.c.l.b16 %v1223
    %v1364 = vunpack.c.l.b16 %v1224
    %v1365 = vunpack.c.l.b16 %v1225
    %v1366 = vunpack.c.l.b16 %v1226
    %v1367 = vunpack.c.l.b16 %v1227
    %v1368 = vunpack.c.l.b16 %v1228
    %v1369 = vunpack.c.l.b16 %v1229
    %v1370 = vunpack.c.l.b16 %v1230
    %v1371 = vpack.c.b16 %v1324, %v1323
    %v1372 = vpack.c.b16 %v1326, %v1325
    %v1373 = vpack.c.b16 %v1328, %v1327
    %v1374 = vpack.c.b16 %v1330, %v1329
    %v1375 = vpack.c.b16 %v1332, %v1331
    %v1376 = vpack.c.b16 %v1334, %v1333
    %v1377 = vpack.c.b16 %v1336, %v1335
    %v1378 = vpack.c.b16 %v1338, %v1337
    %v1379 = vpack.c.b16 %v1340, %v1339
    %v1380 = vpack.c.b16 %v1342, %v1341
    %v1381 = vpack.c.b16 %v1344, %v1343
    %v1382 = vpack.c.b16 %v1346, %v1345
    %v1383 = vpack.c.b16 %v1348, %v1347
    %v1384 = vpack.c.b16 %v1350, %v1349
    %v1385 = vpack.c.b16 %v1352, %v1351
    %v1386 = vpack.c.b16 %v1354, %v1353
    %v1387 = vpack.c.b16 %v1356, %v1355
    %v1388 = vpack.c.b16 %v1358, %v1357
    %v1389 = vpack.c.b16 %v1360, %v1359
    %v1390 = vpack.c.b16 %v1362, %v1361
    %v1391 = vpack.c.b16 %v1364, %v1363
    %v1392 = vpack.c.b16 %v1366, %v1365
    %v1393 = vpack.c.b16 %v1368, %v1367
    %v1394 = vpack.c.b16 %v1370, %v1369
    %1419 = vmatprep.subr.bf16.mxu0 0
    %1420 = vmatpush1.bf16.msra.mxu0 %v1371
    %1421 = vmatprep.subr.bf16.mxu0 0
    %1422 = vmatpush1.bf16.msra.mxu0 %v1372
    %1423 = vmatprep.subr.bf16.mxu0 0
    %1424 = vmatpush1.bf16.msra.mxu0 %v1373
    %1425 = vmatprep.subr.bf16.mxu0 0
    %1426 = vmatpush1.bf16.msra.mxu0 %v1374
    %1427 = vmatprep.subr.bf16.mxu0 0
    %1428 = vmatpush1.bf16.msra.mxu0 %v1375
    %1429 = vmatprep.subr.bf16.mxu0 0
    %1430 = vmatpush1.bf16.msra.mxu0 %v1376
    %1431 = vmatprep.subr.bf16.mxu0 0
    %1432 = vmatpush1.bf16.msra.mxu0 %v1377
    %1433 = vmatprep.subr.bf16.mxu0 0
    %1434 = vmatpush1.bf16.msra.mxu0 %v1378
    %1435 = vmatprep.subr.bf16.mxu0 0
    %1436 = vmatpush1.bf16.msra.mxu0 %v1379
    %1437 = vmatprep.subr.bf16.mxu0 0
    %1438 = vmatpush1.bf16.msra.mxu0 %v1380
    %1439 = vmatprep.subr.bf16.mxu0 0
    %1440 = vmatpush1.bf16.msra.mxu0 %v1381
    %1441 = vmatprep.subr.bf16.mxu0 0
    %1442 = vmatpush1.bf16.msra.mxu0 %v1382
    %1443 = vmatprep.subr.bf16.mxu0 0
    %1444 = vmatpush1.bf16.msra.mxu0 %v1383
    %1445 = vmatprep.subr.bf16.mxu0 0
    %1446 = vmatpush1.bf16.msra.mxu0 %v1384
    %1447 = vmatprep.subr.bf16.mxu0 0
    %1448 = vmatpush1.bf16.msra.mxu0 %v1385
    %1449 = vmatprep.subr.bf16.mxu0 0
    %1450 = vmatpush1.bf16.msra.mxu0 %v1386
    %1451 = vmatprep.mubr.bf16.mxu0 %v1263
    %1452 = vmatmul.mubr.bf16.gmra.mrb[0].mxu0 %v1247
    %v1453 = vpop.f32.mrb[0].mxu0
    %v1454 = vadd.f32 %v1273, %v1453
    %v1455 = vpop.f32.mrb[0].mxu0
    %v1456 = vpop.f32.mrb[0].mxu0
    %v1457 = vadd.f32 %v1273, %v1456
    %v1458 = vpop.f32.mrb[0].mxu0
    %1459 = vmatprep.mubr.bf16.mxu0 %v1266
    %1460 = vmatmul.mubr.bf16.gmra.mrb[0].mxu0 %v1250
    %v1461 = vpop.f32.mrb[0].mxu0
    %v1462 = vadd.f32 %v1273, %v1461
    %v1463 = vpop.f32.mrb[0].mxu0
    %v1464 = vpop.f32.mrb[0].mxu0
    %v1465 = vadd.f32 %v1273, %v1464
    %v1466 = vpop.f32.mrb[0].mxu0
    %1467 = vdwg.mxu0
    %1468 = vmatprep.subr.bf16.mxu0 0
    %1469 = vmatpush1.bf16.msra.mxu0 %v1387
    %1470 = vmatprep.subr.bf16.mxu0 0
    %1471 = vmatpush1.bf16.msra.mxu0 %v1388
    %1472 = vmatprep.subr.bf16.mxu0 0
    %1473 = vmatpush1.bf16.msra.mxu0 %v1389
    %1474 = vmatprep.subr.bf16.mxu0 0
    %1475 = vmatpush1.bf16.msra.mxu0 %v1390
    %1476 = vmatprep.subr.bf16.mxu0 0
    %1477 = vmatpush1.bf16.msra.mxu0 %v1391
    %1478 = vmatprep.subr.bf16.mxu0 0
    %1479 = vmatpush1.bf16.msra.mxu0 %v1392
    %1480 = vmatprep.subr.bf16.mxu0 0
    %1481 = vmatpush1.bf16.msra.mxu0 %v1393
    %1482 = vmatprep.subr.bf16.mxu0 0
    %1483 = vmatpush1.bf16.msra.mxu0 %v1394
    %1484 = vmatprep.subr.bf16.mxu0 0
    %1485 = vmatpush1.bf16.msra.mxu0 0
    %1486 = vmatprep.subr.bf16.mxu0 0
    %1487 = vmatpush1.bf16.msra.mxu0 0
    %1488 = vmatprep.subr.bf16.mxu0 0
    %1489 = vmatpush1.bf16.msra.mxu0 0
    %1490 = vmatprep.subr.bf16.mxu0 0
    %1491 = vmatpush1.bf16.msra.mxu0 0
    %1492 = vmatprep.subr.bf16.mxu0 0
    %1493 = vmatpush1.bf16.msra.mxu0 0
    %1494 = vmatprep.subr.bf16.mxu0 0
    %1495 = vmatpush1.bf16.msra.mxu0 0
    %1496 = vmatprep.subr.bf16.mxu0 0
    %1497 = vmatpush1.bf16.msra.mxu0 0
    %1498 = vmatprep.subr.bf16.mxu0 0
    %1499 = vmatpush1.bf16.msra.mxu0 0
    %1500 = vmatprep.mubr.bf16.mxu0 0
    %1501 = vmatmul.mubr.bf16.gmra.mrb[0].mxu0 %v1233
    %v1502 = vpop.f32.mrb[0].mxu0
    %v1503 = vadd.f32 %v1454, %v1502
    %v1504 = vpop.f32.mrb[0].mxu0
    %v1505 = vpop.f32.mrb[0].mxu0
    %v1506 = vadd.f32 %v1457, %v1505
    %v1507 = vpop.f32.mrb[0].mxu0
    %1508 = vmatprep.mubr.bf16.mxu0 0
    %1509 = vmatmul.mubr.bf16.gmra.mrb[0].mxu0 %v1234
    %v1510 = vpop.f32.mrb[0].mxu0
    %v1511 = vadd.f32 %v1462, %v1510
    %v1512 = vpop.f32.mrb[0].mxu0
    %v1513 = vpop.f32.mrb[0].mxu0
    %v1514 = vadd.f32 %v1465, %v1513
    %v1515 = vpop.f32.mrb[0].mxu0
    %1516 = vdwg.mxu0
    %v1517 = vmax.f32 %v1503, 0.0
    %v1518 = vmax.f32 %v1506, 0.0
    %v1519 = vmax.f32 %v1511, 0.0
    %v1520 = vmax.f32 %v1514, 0.0
    %v1521 = vadd.f32 %v1517, %v838
    %v1522 = vadd.f32 %v1518, %v839
    %v1523 = vadd.f32 %v1519, %v840
    %v1524 = vadd.f32 %v1520, %v841
    %v1525 = vmax.f32 %v1521, 0.0
    %v1526 = vmax.f32 %v1522, 0.0
    %v1527 = vmax.f32 %v1523, 0.0
    %v1528 = vmax.f32 %v1524, 0.0
    %s1529 = scalar_lea.vmem [#allocation3], 384
    %v1530 = vld [vmem:[%s1529] sm:$0xf]
    %v1531 = vld [vmem:[%s1529 + $0x4] sm:$0xf]
    %v1532 = vld [vmem:[%s1529 + $0x8] sm:$0xf]
    %v1533 = vld [vmem:[%s1529 + $0xc] sm:$0xf]
    %v1534 = vld [vmem:[%s1529 + $0x10] sm:$0xf]
    %v1535 = vld [vmem:[%s1529 + $0x14] sm:$0xf]
    %v1536 = vld [vmem:[%s1529 + $0x18] sm:$0xf]
    %v1537 = vld [vmem:[%s1529 + $0x1c] sm:$0xf]
    %v1538 = vld [vmem:[%s1529 + $0x20] sm:$0xf]
    %v1539 = vld [vmem:[%s1529 + $0x24] sm:$0xf]
    %v1540 = vld [vmem:[%s1529 + $0x28] sm:$0xf]
    %v1541 = vld [vmem:[%s1529 + $0x2c] sm:$0xf]
    %v1542 = vld [vmem:[%s1529 + $0x30] sm:$0xf]
    %v1543 = vld [vmem:[%s1529 + $0x34] sm:$0xf]
    %v1544 = vld [vmem:[%s1529 + $0x38] sm:$0xf]
    %v1545 = vld [vmem:[%s1529 + $0x3c] sm:$0xf]
    %v1546 = vld [vmem:[%s1529 + $0x40] sm:$0xf]
    %v1547 = vld [vmem:[%s1529 + $0x44] sm:$0xf]
    %v1548 = vld [vmem:[%s1529 + $0x48] sm:$0xf]
    %v1549 = vld [vmem:[%s1529 + $0x4c] sm:$0xf]
    %v1550 = vld [vmem:[%s1529 + $0x50] sm:$0xf]
    %v1551 = vld [vmem:[%s1529 + $0x54] sm:$0xf]
    %v1552 = vld [vmem:[%s1529 + $0x58] sm:$0xf]
    %v1553 = vld [vmem:[%s1529 + $0x5c] sm:$0xf]
    %v1554 = vld [vmem:[%s1529 + $0x60] sm:$0xf]
    %v1555 = vld [vmem:[%s1529 + $0x64] sm:$0xf]
    %v1556 = vld [vmem:[%s1529 + $0x68] sm:$0xf]
    %v1557 = vld [vmem:[%s1529 + $0x6c] sm:$0xf]
    %v1558 = vld [vmem:[%s1529 + $0x70] sm:$0xf]
    %v1559 = vld [vmem:[%s1529 + $0x74] sm:$0xf]
    %v1560 = vld [vmem:[%s1529 + $0x78] sm:$0xf]
    %v1561 = vld [vmem:[%s1529 + $0x7c] sm:$0xf]
    %v1562 = vld [vmem:[%s1529 + $0x80] sm:$0xf]
    %v1563 = vld [vmem:[%s1529 + $0x84] sm:$0xf]
    %v1564 = vld [vmem:[%s1529 + $0x88] sm:$0xf]
    %v1565 = vld [vmem:[%s1529 + $0x8c] sm:$0xf]
    %v1566 = vld [vmem:[%s1529 + $0x90] sm:$0xf]
    %v1567 = vld [vmem:[%s1529 + $0x94] sm:$0xf]
    %v1568 = vld [vmem:[%s1529 + $0x98] sm:$0xf]
    %v1569 = vld [vmem:[%s1529 + $0x9c] sm:$0xf]
    %v1570 = vld [vmem:[%s1529 + $0xa0] sm:$0xf]
    %v1571 = vld [vmem:[%s1529 + $0xa4] sm:$0xf]
    %v1572 = vld [vmem:[%s1529 + $0xa8] sm:$0xf]
    %v1573 = vld [vmem:[%s1529 + $0xac] sm:$0xf]
    %v1574 = vld [vmem:[%s1529 + $0xb0] sm:$0xf]
    %v1575 = vld [vmem:[%s1529 + $0xb4] sm:$0xf]
    %v1576 = vld [vmem:[%s1529 + $0xb8] sm:$0xf]
    %v1577 = vld [vmem:[%s1529 + $0xbc] sm:$0xf]
    %s1578 = scalar_lea.vmem %s2, 2
    %v1579 = vld [vmem:[%s1578] sm:$0x1]
    %v1580 = vpack.c.bf16 %v1526, %v1525
    %v1581 = vpack.c.bf16 %v1528, %v1527
    %1582 = vst [vmem:[#allocation2 + $0x8] sm:$0xff] %v1580
    %1583 = vst [vmem:[#allocation2 + $0x18] sm:$0xff] %v1581
    %v1584 = vld [vmem:[#allocation2] sm:$0xf0]
    %v1585 = vld [vmem:[#allocation2 + $0x8] sm:$0xf]
    %v1586 = vld [vmem:[#allocation2 + $0x10] sm:$0xf0]
    %v1587 = vld [vmem:[#allocation2 + $0x18] sm:$0xf]
    %vm1592 = vcmask 1043456
    %v1593 = vrot.slane %v1584, 4
    %v1594 = vrot.slane %v1585, 4
    %v1595 = vsel %vm1592, %v1593, %v1594
    %v1596 = vrot.slane %v1586, 4
    %v1597 = vrot.slane %v1587, 4
    %v1598 = vsel %vm1592, %v1596, %v1597
    %v1601 = vld [vmem:[#allocation2] sm:$0xc0]
    %v1602 = vld [vmem:[#allocation2 + $0x8] sm:$0x3f]
    %v1603 = vld [vmem:[#allocation2 + $0x10] sm:$0xc0]
    %v1604 = vld [vmem:[#allocation2 + $0x18] sm:$0x3f]
    %v1609 = vrot.slane %v1601, 6
    %v1610 = vrot.slane %v1602, 6
    %v1611 = vsel %vm905, %v1609, %v1610
    %v1612 = vrot.slane %v1603, 6
    %v1613 = vrot.slane %v1604, 6
    %v1614 = vsel %vm905, %v1612, %v1613
    %v1618 = vlaneseq
    %v1619 = vshrl.u32 %v1618, 7
    %v1620 = vsub.s32 0, %v1619
    %v1621 = vrot.slane %v1579, %v1620
    %v1671 = vunpack.c.l.b16 %v1530
    %v1672 = vunpack.c.l.b16 %v1531
    %v1673 = vunpack.c.l.b16 %v1532
    %v1674 = vunpack.c.l.b16 %v1533
    %v1675 = vunpack.c.l.b16 %v1534
    %v1676 = vunpack.c.l.b16 %v1535
    %v1677 = vunpack.c.l.b16 %v1536
    %v1678 = vunpack.c.l.b16 %v1537
    %v1679 = vunpack.c.l.b16 %v1538
    %v1680 = vunpack.c.l.b16 %v1539
    %v1681 = vunpack.c.l.b16 %v1540
    %v1682 = vunpack.c.l.b16 %v1541
    %v1683 = vunpack.c.l.b16 %v1542
    %v1684 = vunpack.c.l.b16 %v1543
    %v1685 = vunpack.c.l.b16 %v1544
    %v1686 = vunpack.c.l.b16 %v1545
    %v1687 = vunpack.c.l.b16 %v1546
    %v1688 = vunpack.c.l.b16 %v1547
    %v1689 = vunpack.c.l.b16 %v1548
    %v1690 = vunpack.c.l.b16 %v1549
    %v1691 = vunpack.c.l.b16 %v1550
    %v1692 = vunpack.c.l.b16 %v1551
    %v1693 = vunpack.c.l.b16 %v1552
    %v1694 = vunpack.c.l.b16 %v1553
    %v1695 = vunpack.c.l.b16 %v1554
    %v1696 = vunpack.c.l.b16 %v1555
    %v1697 = vunpack.c.l.b16 %v1556
    %v1698 = vunpack.c.l.b16 %v1557
    %v1699 = vunpack.c.l.b16 %v1558
    %v1700 = vunpack.c.l.b16 %v1559
    %v1701 = vunpack.c.l.b16 %v1560
    %v1702 = vunpack.c.l.b16 %v1561
    %v1703 = vunpack.c.l.b16 %v1562
    %v1704 = vunpack.c.l.b16 %v1563
    %v1705 = vunpack.c.l.b16 %v1564
    %v1706 = vunpack.c.l.b16 %v1565
    %v1707 = vunpack.c.l.b16 %v1566
    %v1708 = vunpack.c.l.b16 %v1567
    %v1709 = vunpack.c.l.b16 %v1568
    %v1710 = vunpack.c.l.b16 %v1569
    %v1711 = vunpack.c.l.b16 %v1570
    %v1712 = vunpack.c.l.b16 %v1571
    %v1713 = vunpack.c.l.b16 %v1572
    %v1714 = vunpack.c.l.b16 %v1573
    %v1715 = vunpack.c.l.b16 %v1574
    %v1716 = vunpack.c.l.b16 %v1575
    %v1717 = vunpack.c.l.b16 %v1576
    %v1718 = vunpack.c.l.b16 %v1577
    %v1719 = vpack.c.b16 %v1672, %v1671
    %v1720 = vpack.c.b16 %v1674, %v1673
    %v1721 = vpack.c.b16 %v1676, %v1675
    %v1722 = vpack.c.b16 %v1678, %v1677
    %v1723 = vpack.c.b16 %v1680, %v1679
    %v1724 = vpack.c.b16 %v1682, %v1681
    %v1725 = vpack.c.b16 %v1684, %v1683
    %v1726 = vpack.c.b16 %v1686, %v1685
    %v1727 = vpack.c.b16 %v1688, %v1687
    %v1728 = vpack.c.b16 %v1690, %v1689
    %v1729 = vpack.c.b16 %v1692, %v1691
    %v1730 = vpack.c.b16 %v1694, %v1693
    %v1731 = vpack.c.b16 %v1696, %v1695
    %v1732 = vpack.c.b16 %v1698, %v1697
    %v1733 = vpack.c.b16 %v1700, %v1699
    %v1734 = vpack.c.b16 %v1702, %v1701
    %v1735 = vpack.c.b16 %v1704, %v1703
    %v1736 = vpack.c.b16 %v1706, %v1705
    %v1737 = vpack.c.b16 %v1708, %v1707
    %v1738 = vpack.c.b16 %v1710, %v1709
    %v1739 = vpack.c.b16 %v1712, %v1711
    %v1740 = vpack.c.b16 %v1714, %v1713
    %v1741 = vpack.c.b16 %v1716, %v1715
    %v1742 = vpack.c.b16 %v1718, %v1717
    %1767 = vmatprep.subr.bf16.mxu0 0
    %1768 = vmatpush1.bf16.msra.mxu0 %v1719
    %1769 = vmatprep.subr.bf16.mxu0 0
    %1770 = vmatpush1.bf16.msra.mxu0 %v1720
    %1771 = vmatprep.subr.bf16.mxu0 0
    %1772 = vmatpush1.bf16.msra.mxu0 %v1721
    %1773 = vmatprep.subr.bf16.mxu0 0
    %1774 = vmatpush1.bf16.msra.mxu0 %v1722
    %1775 = vmatprep.subr.bf16.mxu0 0
    %1776 = vmatpush1.bf16.msra.mxu0 %v1723
    %1777 = vmatprep.subr.bf16.mxu0 0
    %1778 = vmatpush1.bf16.msra.mxu0 %v1724
    %1779 = vmatprep.subr.bf16.mxu0 0
    %1780 = vmatpush1.bf16.msra.mxu0 %v1725
    %1781 = vmatprep.subr.bf16.mxu0 0
    %1782 = vmatpush1.bf16.msra.mxu0 %v1726
    %1783 = vmatprep.subr.bf16.mxu0 0
    %1784 = vmatpush1.bf16.msra.mxu0 %v1727
    %1785 = vmatprep.subr.bf16.mxu0 0
    %1786 = vmatpush1.bf16.msra.mxu0 %v1728
    %1787 = vmatprep.subr.bf16.mxu0 0
    %1788 = vmatpush1.bf16.msra.mxu0 %v1729
    %1789 = vmatprep.subr.bf16.mxu0 0
    %1790 = vmatpush1.bf16.msra.mxu0 %v1730
    %1791 = vmatprep.subr.bf16.mxu0 0
    %1792 = vmatpush1.bf16.msra.mxu0 %v1731
    %1793 = vmatprep.subr.bf16.mxu0 0
    %1794 = vmatpush1.bf16.msra.mxu0 %v1732
    %1795 = vmatprep.subr.bf16.mxu0 0
    %1796 = vmatpush1.bf16.msra.mxu0 %v1733
    %1797 = vmatprep.subr.bf16.mxu0 0
    %1798 = vmatpush1.bf16.msra.mxu0 %v1734
    %1799 = vmatprep.mubr.bf16.mxu0 %v1611
    %1800 = vmatmul.mubr.bf16.gmra.mrb[0].mxu0 %v1595
    %v1801 = vpop.f32.mrb[0].mxu0
    %v1802 = vadd.f32 %v1621, %v1801
    %v1803 = vpop.f32.mrb[0].mxu0
    %v1804 = vpop.f32.mrb[0].mxu0
    %v1805 = vadd.f32 %v1621, %v1804
    %v1806 = vpop.f32.mrb[0].mxu0
    %1807 = vmatprep.mubr.bf16.mxu0 %v1614
    %1808 = vmatmul.mubr.bf16.gmra.mrb[0].mxu0 %v1598
    %v1809 = vpop.f32.mrb[0].mxu0
    %v1810 = vadd.f32 %v1621, %v1809
    %v1811 = vpop.f32.mrb[0].mxu0
    %v1812 = vpop.f32.mrb[0].mxu0
    %v1813 = vadd.f32 %v1621, %v1812
    %v1814 = vpop.f32.mrb[0].mxu0
    %1815 = vdwg.mxu0
    %1816 = vmatprep.subr.bf16.mxu0 0
    %1817 = vmatpush1.bf16.msra.mxu0 %v1735
    %1818 = vmatprep.subr.bf16.mxu0 0
    %1819 = vmatpush1.bf16.msra.mxu0 %v1736
    %1820 = vmatprep.subr.bf16.mxu0 0
    %1821 = vmatpush1.bf16.msra.mxu0 %v1737
    %1822 = vmatprep.subr.bf16.mxu0 0
    %1823 = vmatpush1.bf16.msra.mxu0 %v1738
    %1824 = vmatprep.subr.bf16.mxu0 0
    %1825 = vmatpush1.bf16.msra.mxu0 %v1739
    %1826 = vmatprep.subr.bf16.mxu0 0
    %1827 = vmatpush1.bf16.msra.mxu0 %v1740
    %1828 = vmatprep.subr.bf16.mxu0 0
    %1829 = vmatpush1.bf16.msra.mxu0 %v1741
    %1830 = vmatprep.subr.bf16.mxu0 0
    %1831 = vmatpush1.bf16.msra.mxu0 %v1742
    %1832 = vmatprep.subr.bf16.mxu0 0
    %1833 = vmatpush1.bf16.msra.mxu0 0
    %1834 = vmatprep.subr.bf16.mxu0 0
    %1835 = vmatpush1.bf16.msra.mxu0 0
    %1836 = vmatprep.subr.bf16.mxu0 0
    %1837 = vmatpush1.bf16.msra.mxu0 0
    %1838 = vmatprep.subr.bf16.mxu0 0
    %1839 = vmatpush1.bf16.msra.mxu0 0
    %1840 = vmatprep.subr.bf16.mxu0 0
    %1841 = vmatpush1.bf16.msra.mxu0 0
    %1842 = vmatprep.subr.bf16.mxu0 0
    %1843 = vmatpush1.bf16.msra.mxu0 0
    %1844 = vmatprep.subr.bf16.mxu0 0
    %1845 = vmatpush1.bf16.msra.mxu0 0
    %1846 = vmatprep.subr.bf16.mxu0 0
    %1847 = vmatpush1.bf16.msra.mxu0 0
    %1848 = vmatprep.mubr.bf16.mxu0 0
    %1849 = vmatmul.mubr.bf16.gmra.mrb[0].mxu0 %v1580
    %v1850 = vpop.f32.mrb[0].mxu0
    %v1851 = vadd.f32 %v1802, %v1850
    %v1852 = vpop.f32.mrb[0].mxu0
    %v1853 = vpop.f32.mrb[0].mxu0
    %v1854 = vadd.f32 %v1805, %v1853
    %v1855 = vpop.f32.mrb[0].mxu0
    %1856 = vmatprep.mubr.bf16.mxu0 0
    %1857 = vmatmul.mubr.bf16.gmra.mrb[0].mxu0 %v1581
    %v1858 = vpop.f32.mrb[0].mxu0
    %v1859 = vadd.f32 %v1810, %v1858
    %v1860 = vpop.f32.mrb[0].mxu0
    %v1861 = vpop.f32.mrb[0].mxu0
    %v1862 = vadd.f32 %v1813, %v1861
    %v1863 = vpop.f32.mrb[0].mxu0
    %1864 = vdwg.mxu0
    %v1865 = vmax.f32 %v1851, 0.0
    %v1866 = vmax.f32 %v1854, 0.0
    %v1867 = vmax.f32 %v1859, 0.0
    %v1868 = vmax.f32 %v1862, 0.0
    %s1869 = scalar_lea.vmem [#allocation5], 384
    %v1870 = vld [vmem:[%s1869] sm:$0xf]
    %v1871 = vld [vmem:[%s1869 + $0x4] sm:$0xf]
    %v1872 = vld [vmem:[%s1869 + $0x8] sm:$0xf]
    %v1873 = vld [vmem:[%s1869 + $0xc] sm:$0xf]
    %v1874 = vld [vmem:[%s1869 + $0x10] sm:$0xf]
    %v1875 = vld [vmem:[%s1869 + $0x14] sm:$0xf]
    %v1876 = vld [vmem:[%s1869 + $0x18] sm:$0xf]
    %v1877 = vld [vmem:[%s1869 + $0x1c] sm:$0xf]
    %v1878 = vld [vmem:[%s1869 + $0x20] sm:$0xf]
    %v1879 = vld [vmem:[%s1869 + $0x24] sm:$0xf]
    %v1880 = vld [vmem:[%s1869 + $0x28] sm:$0xf]
    %v1881 = vld [vmem:[%s1869 + $0x2c] sm:$0xf]
    %v1882 = vld [vmem:[%s1869 + $0x30] sm:$0xf]
    %v1883 = vld [vmem:[%s1869 + $0x34] sm:$0xf]
    %v1884 = vld [vmem:[%s1869 + $0x38] sm:$0xf]
    %v1885 = vld [vmem:[%s1869 + $0x3c] sm:$0xf]
    %v1886 = vld [vmem:[%s1869 + $0x40] sm:$0xf]
    %v1887 = vld [vmem:[%s1869 + $0x44] sm:$0xf]
    %v1888 = vld [vmem:[%s1869 + $0x48] sm:$0xf]
    %v1889 = vld [vmem:[%s1869 + $0x4c] sm:$0xf]
    %v1890 = vld [vmem:[%s1869 + $0x50] sm:$0xf]
    %v1891 = vld [vmem:[%s1869 + $0x54] sm:$0xf]
    %v1892 = vld [vmem:[%s1869 + $0x58] sm:$0xf]
    %v1893 = vld [vmem:[%s1869 + $0x5c] sm:$0xf]
    %v1894 = vld [vmem:[%s1869 + $0x60] sm:$0xf]
    %v1895 = vld [vmem:[%s1869 + $0x64] sm:$0xf]
    %v1896 = vld [vmem:[%s1869 + $0x68] sm:$0xf]
    %v1897 = vld [vmem:[%s1869 + $0x6c] sm:$0xf]
    %v1898 = vld [vmem:[%s1869 + $0x70] sm:$0xf]
    %v1899 = vld [vmem:[%s1869 + $0x74] sm:$0xf]
    %v1900 = vld [vmem:[%s1869 + $0x78] sm:$0xf]
    %v1901 = vld [vmem:[%s1869 + $0x7c] sm:$0xf]
    %v1902 = vld [vmem:[%s1869 + $0x80] sm:$0xf]
    %v1903 = vld [vmem:[%s1869 + $0x84] sm:$0xf]
    %v1904 = vld [vmem:[%s1869 + $0x88] sm:$0xf]
    %v1905 = vld [vmem:[%s1869 + $0x8c] sm:$0xf]
    %v1906 = vld [vmem:[%s1869 + $0x90] sm:$0xf]
    %v1907 = vld [vmem:[%s1869 + $0x94] sm:$0xf]
    %v1908 = vld [vmem:[%s1869 + $0x98] sm:$0xf]
    %v1909 = vld [vmem:[%s1869 + $0x9c] sm:$0xf]
    %v1910 = vld [vmem:[%s1869 + $0xa0] sm:$0xf]
    %v1911 = vld [vmem:[%s1869 + $0xa4] sm:$0xf]
    %v1912 = vld [vmem:[%s1869 + $0xa8] sm:$0xf]
    %v1913 = vld [vmem:[%s1869 + $0xac] sm:$0xf]
    %v1914 = vld [vmem:[%s1869 + $0xb0] sm:$0xf]
    %v1915 = vld [vmem:[%s1869 + $0xb4] sm:$0xf]
    %v1916 = vld [vmem:[%s1869 + $0xb8] sm:$0xf]
    %v1917 = vld [vmem:[%s1869 + $0xbc] sm:$0xf]
    %s1918 = scalar_lea.vmem %s4, 2
    %v1919 = vld [vmem:[%s1918] sm:$0x1]
    %v1920 = vpack.c.bf16 %v1866, %v1865
    %v1921 = vpack.c.bf16 %v1868, %v1867
    %1922 = vst [vmem:[#allocation2 + $0x8] sm:$0xff] %v1920
    %1923 = vst [vmem:[#allocation2 + $0x18] sm:$0xff] %v1921
    %v1924 = vld [vmem:[#allocation2] sm:$0xf0]
    %v1925 = vld [vmem:[#allocation2 + $0x8] sm:$0xf]
    %v1926 = vld [vmem:[#allocation2 + $0x10] sm:$0xf0]
    %v1927 = vld [vmem:[#allocation2 + $0x18] sm:$0xf]
    %v1932 = vrot.slane %v1924, 4
    %v1933 = vrot.slane %v1925, 4
    %v1934 = vsel %vm1592, %v1932, %v1933
    %v1935 = vrot.slane %v1926, 4
    %v1936 = vrot.slane %v1927, 4
    %v1937 = vsel %vm1592, %v1935, %v1936
    %v1940 = vld [vmem:[#allocation2] sm:$0xc0]
    %v1941 = vld [vmem:[#allocation2 + $0x8] sm:$0x3f]
    %v1942 = vld [vmem:[#allocation2 + $0x10] sm:$0xc0]
    %v1943 = vld [vmem:[#allocation2 + $0x18] sm:$0x3f]
    %v1948 = vrot.slane %v1940, 6
    %v1949 = vrot.slane %v1941, 6
    %v1950 = vsel %vm905, %v1948, %v1949
    %v1951 = vrot.slane %v1942, 6
    %v1952 = vrot.slane %v1943, 6
    %v1953 = vsel %vm905, %v1951, %v1952
    %v1957 = vlaneseq
    %v1958 = vshrl.u32 %v1957, 7
    %v1959 = vsub.s32 0, %v1958
    %v1960 = vrot.slane %v1919, %v1959
    %v2010 = vunpack.c.l.b16 %v1870
    %v2011 = vunpack.c.l.b16 %v1871
    %v2012 = vunpack.c.l.b16 %v1872
    %v2013 = vunpack.c.l.b16 %v1873
    %v2014 = vunpack.c.l.b16 %v1874
    %v2015 = vunpack.c.l.b16 %v1875
    %v2016 = vunpack.c.l.b16 %v1876
    %v2017 = vunpack.c.l.b16 %v1877
    %v2018 = vunpack.c.l.b16 %v1878
    %v2019 = vunpack.c.l.b16 %v1879
    %v2020 = vunpack.c.l.b16 %v1880
    %v2021 = vunpack.c.l.b16 %v1881
    %v2022 = vunpack.c.l.b16 %v1882
    %v2023 = vunpack.c.l.b16 %v1883
    %v2024 = vunpack.c.l.b16 %v1884
    %v2025 = vunpack.c.l.b16 %v1885
    %v2026 = vunpack.c.l.b16 %v1886
    %v2027 = vunpack.c.l.b16 %v1887
    %v2028 = vunpack.c.l.b16 %v1888
    %v2029 = vunpack.c.l.b16 %v1889
    %v2030 = vunpack.c.l.b16 %v1890
    %v2031 = vunpack.c.l.b16 %v1891
    %v2032 = vunpack.c.l.b16 %v1892
    %v2033 = vunpack.c.l.b16 %v1893
    %v2034 = vunpack.c.l.b16 %v1894
    %v2035 = vunpack.c.l.b16 %v1895
    %v2036 = vunpack.c.l.b16 %v1896
    %v2037 = vunpack.c.l.b16 %v1897
    %v2038 = vunpack.c.l.b16 %v1898
    %v2039 = vunpack.c.l.b16 %v1899
    %v2040 = vunpack.c.l.b16 %v1900
    %v2041 = vunpack.c.l.b16 %v1901
    %v2042 = vunpack.c.l.b16 %v1902
    %v2043 = vunpack.c.l.b16 %v1903
    %v2044 = vunpack.c.l.b16 %v1904
    %v2045 = vunpack.c.l.b16 %v1905
    %v2046 = vunpack.c.l.b16 %v1906
    %v2047 = vunpack.c.l.b16 %v1907
    %v2048 = vunpack.c.l.b16 %v1908
    %v2049 = vunpack.c.l.b16 %v1909
    %v2050 = vunpack.c.l.b16 %v1910
    %v2051 = vunpack.c.l.b16 %v1911
    %v2052 = vunpack.c.l.b16 %v1912
    %v2053 = vunpack.c.l.b16 %v1913
    %v2054 = vunpack.c.l.b16 %v1914
    %v2055 = vunpack.c.l.b16 %v1915
    %v2056 = vunpack.c.l.b16 %v1916
    %v2057 = vunpack.c.l.b16 %v1917
    %v2058 = vpack.c.b16 %v2011, %v2010
    %v2059 = vpack.c.b16 %v2013, %v2012
    %v2060 = vpack.c.b16 %v2015, %v2014
    %v2061 = vpack.c.b16 %v2017, %v2016
    %v2062 = vpack.c.b16 %v2019, %v2018
    %v2063 = vpack.c.b16 %v2021, %v2020
    %v2064 = vpack.c.b16 %v2023, %v2022
    %v2065 = vpack.c.b16 %v2025, %v2024
    %v2066 = vpack.c.b16 %v2027, %v2026
    %v2067 = vpack.c.b16 %v2029, %v2028
    %v2068 = vpack.c.b16 %v2031, %v2030
    %v2069 = vpack.c.b16 %v2033, %v2032
    %v2070 = vpack.c.b16 %v2035, %v2034
    %v2071 = vpack.c.b16 %v2037, %v2036
    %v2072 = vpack.c.b16 %v2039, %v2038
    %v2073 = vpack.c.b16 %v2041, %v2040
    %v2074 = vpack.c.b16 %v2043, %v2042
    %v2075 = vpack.c.b16 %v2045, %v2044
    %v2076 = vpack.c.b16 %v2047, %v2046
    %v2077 = vpack.c.b16 %v2049, %v2048
    %v2078 = vpack.c.b16 %v2051, %v2050
    %v2079 = vpack.c.b16 %v2053, %v2052
    %v2080 = vpack.c.b16 %v2055, %v2054
    %v2081 = vpack.c.b16 %v2057, %v2056
    %2106 = vmatprep.subr.bf16.mxu0 0
    %2107 = vmatpush1.bf16.msra.mxu0 %v2058
    %2108 = vmatprep.subr.bf16.mxu0 0
    %2109 = vmatpush1.bf16.msra.mxu0 %v2059
    %2110 = vmatprep.subr.bf16.mxu0 0
    %2111 = vmatpush1.bf16.msra.mxu0 %v2060
    %2112 = vmatprep.subr.bf16.mxu0 0
    %2113 = vmatpush1.bf16.msra.mxu0 %v2061
    %2114 = vmatprep.subr.bf16.mxu0 0
    %2115 = vmatpush1.bf16.msra.mxu0 %v2062
    %2116 = vmatprep.subr.bf16.mxu0 0
    %2117 = vmatpush1.bf16.msra.mxu0 %v2063
    %2118 = vmatprep.subr.bf16.mxu0 0
    %2119 = vmatpush1.bf16.msra.mxu0 %v2064
    %2120 = vmatprep.subr.bf16.mxu0 0
    %2121 = vmatpush1.bf16.msra.mxu0 %v2065
    %2122 = vmatprep.subr.bf16.mxu0 0
    %2123 = vmatpush1.bf16.msra.mxu0 %v2066
    %2124 = vmatprep.subr.bf16.mxu0 0
    %2125 = vmatpush1.bf16.msra.mxu0 %v2067
    %2126 = vmatprep.subr.bf16.mxu0 0
    %2127 = vmatpush1.bf16.msra.mxu0 %v2068
    %2128 = vmatprep.subr.bf16.mxu0 0
    %2129 = vmatpush1.bf16.msra.mxu0 %v2069
    %2130 = vmatprep.subr.bf16.mxu0 0
    %2131 = vmatpush1.bf16.msra.mxu0 %v2070
    %2132 = vmatprep.subr.bf16.mxu0 0
    %2133 = vmatpush1.bf16.msra.mxu0 %v2071
    %2134 = vmatprep.subr.bf16.mxu0 0
    %2135 = vmatpush1.bf16.msra.mxu0 %v2072
    %2136 = vmatprep.subr.bf16.mxu0 0
    %2137 = vmatpush1.bf16.msra.mxu0 %v2073
    %2138 = vmatprep.mubr.bf16.mxu0 %v1950
    %2139 = vmatmul.mubr.bf16.gmra.mrb[0].mxu0 %v1934
    %v2140 = vpop.f32.mrb[0].mxu0
    %v2141 = vadd.f32 %v1960, %v2140
    %v2142 = vpop.f32.mrb[0].mxu0
    %v2143 = vpop.f32.mrb[0].mxu0
    %v2144 = vadd.f32 %v1960, %v2143
    %v2145 = vpop.f32.mrb[0].mxu0
    %2146 = vmatprep.mubr.bf16.mxu0 %v1953
    %2147 = vmatmul.mubr.bf16.gmra.mrb[0].mxu0 %v1937
    %v2148 = vpop.f32.mrb[0].mxu0
    %v2149 = vadd.f32 %v1960, %v2148
    %v2150 = vpop.f32.mrb[0].mxu0
    %v2151 = vpop.f32.mrb[0].mxu0
    %v2152 = vadd.f32 %v1960, %v2151
    %v2153 = vpop.f32.mrb[0].mxu0
    %2154 = vdwg.mxu0
    %2155 = vmatprep.subr.bf16.mxu0 0
    %2156 = vmatpush1.bf16.msra.mxu0 %v2074
    %2157 = vmatprep.subr.bf16.mxu0 0
    %2158 = vmatpush1.bf16.msra.mxu0 %v2075
    %2159 = vmatprep.subr.bf16.mxu0 0
    %2160 = vmatpush1.bf16.msra.mxu0 %v2076
    %2161 = vmatprep.subr.bf16.mxu0 0
    %2162 = vmatpush1.bf16.msra.mxu0 %v2077
    %2163 = vmatprep.subr.bf16.mxu0 0
    %2164 = vmatpush1.bf16.msra.mxu0 %v2078
    %2165 = vmatprep.subr.bf16.mxu0 0
    %2166 = vmatpush1.bf16.msra.mxu0 %v2079
    %2167 = vmatprep.subr.bf16.mxu0 0
    %2168 = vmatpush1.bf16.msra.mxu0 %v2080
    %2169 = vmatprep.subr.bf16.mxu0 0
    %2170 = vmatpush1.bf16.msra.mxu0 %v2081
    %2171 = vmatprep.subr.bf16.mxu0 0
    %2172 = vmatpush1.bf16.msra.mxu0 0
    %2173 = vmatprep.subr.bf16.mxu0 0
    %2174 = vmatpush1.bf16.msra.mxu0 0
    %2175 = vmatprep.subr.bf16.mxu0 0
    %2176 = vmatpush1.bf16.msra.mxu0 0
    %2177 = vmatprep.subr.bf16.mxu0 0
    %2178 = vmatpush1.bf16.msra.mxu0 0
    %2179 = vmatprep.subr.bf16.mxu0 0
    %2180 = vmatpush1.bf16.msra.mxu0 0
    %2181 = vmatprep.subr.bf16.mxu0 0
    %2182 = vmatpush1.bf16.msra.mxu0 0
    %2183 = vmatprep.subr.bf16.mxu0 0
    %2184 = vmatpush1.bf16.msra.mxu0 0
    %2185 = vmatprep.subr.bf16.mxu0 0
    %2186 = vmatpush1.bf16.msra.mxu0 0
    %2187 = vmatprep.mubr.bf16.mxu0 0
    %2188 = vmatmul.mubr.bf16.gmra.mrb[0].mxu0 %v1920
    %v2189 = vpop.f32.mrb[0].mxu0
    %v2190 = vadd.f32 %v2141, %v2189
    %v2191 = vpop.f32.mrb[0].mxu0
    %v2192 = vpop.f32.mrb[0].mxu0
    %v2193 = vadd.f32 %v2144, %v2192
    %v2194 = vpop.f32.mrb[0].mxu0
    %2195 = vmatprep.mubr.bf16.mxu0 0
    %2196 = vmatmul.mubr.bf16.gmra.mrb[0].mxu0 %v1921
    %v2197 = vpop.f32.mrb[0].mxu0
    %v2198 = vadd.f32 %v2149, %v2197
    %v2199 = vpop.f32.mrb[0].mxu0
    %v2200 = vpop.f32.mrb[0].mxu0
    %v2201 = vadd.f32 %v2152, %v2200
    %v2202 = vpop.f32.mrb[0].mxu0
    %2203 = vdwg.mxu0
    %v2204 = vmax.f32 %v2190, 0.0
    %v2205 = vmax.f32 %v2193, 0.0
    %v2206 = vmax.f32 %v2198, 0.0
    %v2207 = vmax.f32 %v2201, 0.0
    %v2208 = vadd.f32 %v2204, %v1525
    %v2209 = vadd.f32 %v2205, %v1526
    %v2210 = vadd.f32 %v2206, %v1527
    %v2211 = vadd.f32 %v2207, %v1528
    %v2212 = vmax.f32 %v2208, 0.0
    %v2213 = vmax.f32 %v2209, 0.0
    %v2214 = vmax.f32 %v2210, 0.0
    %v2215 = vmax.f32 %v2211, 0.0
    %2216 = vxpose.xlu0.b32.start [1/16] %v2212, 128
    %2217 = vxpose.xlu0.b32.cont [2/16] %v2213, 128
    %2218 = vxpose.xlu0.b32.cont [3/16] 0.0, 128
    %2219 = vxpose.xlu0.b32.cont [4/16] 0.0, 128
    %2220 = vxpose.xlu0.b32.cont [5/16] 0.0, 128
    %2221 = vxpose.xlu0.b32.cont [6/16] 0.0, 128
    %2222 = vxpose.xlu0.b32.cont [7/16] 0.0, 128
    %2223 = vxpose.xlu0.b32.cont [8/16] 0.0, 128
    %2224 = vxpose.xlu0.b32.cont [9/16] 0.0, 128
    %2225 = vxpose.xlu0.b32.cont [10/16] 0.0, 128
    %2226 = vxpose.xlu0.b32.cont [11/16] 0.0, 128
    %2227 = vxpose.xlu0.b32.cont [12/16] 0.0, 128
    %2228 = vxpose.xlu0.b32.cont [13/16] 0.0, 128
    %2229 = vxpose.xlu0.b32.cont [14/16] 0.0, 128
    %2230 = vxpose.xlu0.b32.cont [15/16] 0.0, 128
    %2231 = vxpose.xlu0.b32.end [16/16] 0.0, 128
    %v2232 = vpop.trf.xlu0
    %v2233 = vpop.trf.xlu0
    %v2234 = vpop.trf.xlu0
    %v2235 = vpop.trf.xlu0
    %v2236 = vpop.trf.xlu0
    %v2237 = vpop.trf.xlu0
    %v2238 = vpop.trf.xlu0
    %v2239 = vpop.trf.xlu0
    %v2240 = vpop.trf.xlu0
    %v2241 = vpop.trf.xlu0
    %v2242 = vpop.trf.xlu0
    %v2243 = vpop.trf.xlu0
    %v2244 = vpop.trf.xlu0
    %v2245 = vpop.trf.xlu0
    %v2246 = vpop.trf.xlu0
    %v2247 = vpop.trf.xlu0
    %vm2248 = vcmask 130048
    %2249 = vst.msk [vmem:[%s5] sm:$0xff] %vm2248, %v2232
    %2250 = vst.msk [vmem:[%s5 + $0x8] sm:$0xff] %vm2248, %v2233
    %2251 = vst.msk [vmem:[%s5 + $0x10] sm:$0xff] %vm2248, %v2234
    %2252 = vst.msk [vmem:[%s5 + $0x18] sm:$0xff] %vm2248, %v2235
    %2253 = vst.msk [vmem:[%s5 + $0x20] sm:$0xff] %vm2248, %v2236
    %2254 = vst.msk [vmem:[%s5 + $0x28] sm:$0xff] %vm2248, %v2237
    %2255 = vst.msk [vmem:[%s5 + $0x30] sm:$0xff] %vm2248, %v2238
    %2256 = vst.msk [vmem:[%s5 + $0x38] sm:$0xff] %vm2248, %v2239
    %2257 = vst.msk [vmem:[%s5 + $0x40] sm:$0xff] %vm2248, %v2240
    %2258 = vxpose.xlu0.b32.start [1/16] %v2214, 128
    %2259 = vxpose.xlu0.b32.cont [2/16] %v2215, 128
    %2260 = vxpose.xlu0.b32.cont [3/16] 0.0, 128
    %2261 = vxpose.xlu0.b32.cont [4/16] 0.0, 128
    %2262 = vxpose.xlu0.b32.cont [5/16] 0.0, 128
    %2263 = vxpose.xlu0.b32.cont [6/16] 0.0, 128
    %2264 = vxpose.xlu0.b32.cont [7/16] 0.0, 128
    %2265 = vxpose.xlu0.b32.cont [8/16] 0.0, 128
    %2266 = vxpose.xlu0.b32.cont [9/16] 0.0, 128
    %2267 = vxpose.xlu0.b32.cont [10/16] 0.0, 128
    %2268 = vxpose.xlu0.b32.cont [11/16] 0.0, 128
    %2269 = vxpose.xlu0.b32.cont [12/16] 0.0, 128
    %2270 = vxpose.xlu0.b32.cont [13/16] 0.0, 128
    %2271 = vxpose.xlu0.b32.cont [14/16] 0.0, 128
    %2272 = vxpose.xlu0.b32.cont [15/16] 0.0, 128
    %2273 = vxpose.xlu0.b32.end [16/16] 0.0, 128
    %v2274 = vpop.trf.xlu0
    %v2275 = vpop.trf.xlu0
    %v2276 = vpop.trf.xlu0
    %v2277 = vpop.trf.xlu0
    %v2278 = vpop.trf.xlu0
    %v2279 = vpop.trf.xlu0
    %v2280 = vpop.trf.xlu0
    %v2281 = vpop.trf.xlu0
    %v2282 = vpop.trf.xlu0
    %v2283 = vpop.trf.xlu0
    %v2284 = vpop.trf.xlu0
    %v2285 = vpop.trf.xlu0
    %v2286 = vpop.trf.xlu0
    %v2287 = vpop.trf.xlu0
    %v2288 = vpop.trf.xlu0
    %v2289 = vpop.trf.xlu0
    %s2290 = scalar_lea.vmem %s5, 72
    %2291 = vst.msk [vmem:[%s2290] sm:$0xff] %vm2248, %v2274
    %2292 = vst.msk [vmem:[%s2290 + $0x8] sm:$0xff] %vm2248, %v2275
    %2293 = vst.msk [vmem:[%s2290 + $0x10] sm:$0xff] %vm2248, %v2276
    %2294 = vst.msk [vmem:[%s2290 + $0x18] sm:$0xff] %vm2248, %v2277
    %2295 = vst.msk [vmem:[%s2290 + $0x20] sm:$0xff] %vm2248, %v2278
    %2296 = vst.msk [vmem:[%s2290 + $0x28] sm:$0xff] %vm2248, %v2279
    %2297 = vst.msk [vmem:[%s2290 + $0x30] sm:$0xff] %vm2248, %v2280
    %2298 = vst.msk [vmem:[%s2290 + $0x38] sm:$0xff] %vm2248, %v2281
    %2299 = vst.msk [vmem:[%s2290 + $0x40] sm:$0xff] %vm2248, %v2282
    // Predicated region
    $region30: #{temporal_conv_net.1} parent=1 // pred_check
      _
    $region31: #{temporal_conv_net.1} parent=1 // pred_check_branch
      %2301 = sbr.rel (0) target = $region33
    $region32: #{temporal_conv_net.1} parent=1 // pred_region
      _
    $region33: #{temporal_conv_net.1} parent=1 // pred_fallthru
      _
    // Predicated region
    $region34: #{temporal_conv_net.1} parent=1 // pred_check
      _
    $region35: #{temporal_conv_net.1} parent=1 // pred_check_branch
      %2303 = sbr.rel (0) target = $region37
    $region36: #{temporal_conv_net.1} parent=1 // pred_region
      _
    $region37: #{temporal_conv_net.1} parent=1 // pred_fallthru
      _
    %2304 = vsyncpa [#allocation4], 1
    %2305 = vsyncpa [#allocation6], 1

</llo_original>
